<compile_context>
chip_gen: v5e
topology: v5e:2x2
jax: 0.10.0
libtpu: 0.0.40
codegen_flags: <defaults>
</compile_context>

<pallas_src>
import jax
import jax.numpy as jnp
from jax.experimental import pallas as pl
from jax.experimental.pallas import tpu as pltpu

K = 3            # number of GCN hops (self.K in the torch module)
LN_EPS = 1e-5    # torch.nn.LayerNorm default eps


def _gcn_align_kernel(text_ref, adj1_ref, adj2_ref, mcol_ref, mrow_ref,
                      w_ref, lin_wt_ref, gamma_ref, beta_ref,
                      al_wt_ref, al_b_ref, out_ref):
    BB, T, IN = text_ref.shape
    OUT = w_ref.shape[1]
    bf16 = jnp.bfloat16

    # adj = adj1 + adj2 ; adj[adj >= 1] = 1  ==  elementwise max for 0/1 inputs.
    # Kept in bf16 (exact for 0/1): MXU-native operand, no f32 (BB,T,T) copy.
    adj = jnp.maximum(adj1_ref[...], adj2_ref[...])                  # (BB,T,T) bf16

    # denom = sum(adj, -1) + 1 (f32-accumulated); constant across hops -> hoisted
    # and applied as a (BB,T,1) reciprocal-scale on each hop's (BB,T,OUT) result
    # instead of materializing a normalized f32 adjacency.
    denom = jnp.sum(adj.astype(jnp.float32), axis=-1, keepdims=True) + 1.0
    inv_denom = 1.0 / denom                                          # (BB,T,1) f32

    # Input projection only when in_features != out_features (static branch,
    # mirrors the torch module exactly).
    if IN != OUT:
        flat = text_ref[...].astype(bf16).reshape(BB * T, IN)
        output = jnp.maximum(
            jnp.dot(flat, w_ref[...].astype(bf16),
                    preferred_element_type=jnp.float32),
            0.0).reshape(BB, T, OUT)
    else:
        output = text_ref[...].astype(jnp.float32)

    gamma = gamma_ref[...]                      # (1, OUT)
    beta = beta_ref[...]                        # (1, OUT)
    lin_wt = lin_wt_ref[...].astype(bf16)       # (OUT, OUT) == torch linear.weight.T

    for _ in range(K):
        outs = output
        # One (BB*T, OUT) x (OUT, OUT) bf16 MXU matmul for the whole batch block.
        teout = jnp.dot(output.astype(bf16).reshape(BB * T, OUT), lin_wt,
                        preferred_element_type=jnp.float32)
        h = jnp.einsum('bij,bjd->bid', adj,
                       teout.astype(bf16).reshape(BB, T, OUT),
                       preferred_element_type=jnp.float32)
        h = jnp.maximum(h, 0.0) * inv_denom     # relu((adj @ teout) / denom1)
        # dropout: identity (eval mode).  LayerNorm statistics stay in f32.
        mu = jnp.mean(h, axis=-1, keepdims=True)
        var = jnp.mean((h - mu) * (h - mu), axis=-1, keepdims=True)
        hn = (h - mu) * jax.lax.rsqrt(var + LN_EPS) * gamma + beta
        output = hn + outs                      # norm(output) + outs

    outs1 = output                              # (BB, T, OUT)

    # selfalignment(outs, outs, textmask): bf16 matmul operands, f32 softmax math.
    out_bf = output.astype(bf16)
    q = jnp.dot(out_bf.reshape(BB * T, OUT), al_wt_ref[...].astype(bf16),
                preferred_element_type=jnp.float32).reshape(BB, T, OUT)
    logits = jnp.einsum('bqd,bkd->bqk', q.astype(bf16), out_bf,
                        preferred_element_type=jnp.float32)          # (BB,T,T)
    logits = logits + (1.0 - mrow_ref[...]) * (-1e20)
    logits = logits - jnp.max(logits, axis=-1, keepdims=True)
    logits = jnp.exp(logits)                    # rebind -> single live (BB,T,T) f32
    # EUP reciprocal (approx) on (BB,T,1) + one multiply instead of a full divide.
    p = logits * pl.reciprocal(jnp.sum(logits, axis=-1, keepdims=True),
                               approx=True)
    al = jnp.einsum('bqk,bkd->bqd', p.astype(bf16), out_bf,
                    preferred_element_type=jnp.float32)
    al = al * mcol_ref[...] + al_b_ref[...]

    # Fused torch.cat([align(outs), outs1], -1): static-slice stores into one
    # lane-dense (BB, T, 2*OUT) output; no extra HBM round trip in the wrapper.
    out_ref[:, :, :OUT] = al.astype(out_ref.dtype)
    out_ref[:, :, OUT:] = outs1.astype(out_ref.dtype)


def simple_gcn_alignment_nohete(params, text, adj1, adj2, edge1, edge2, textmask,
                                *, block_batch=8):
    """Forward pass matching simpleGraphConvolutionalignment_noHete (eval mode)."""
    # The torch forward computes edge_vocab(edge1+edge2) but never uses it.
    del edge1, edge2

    attss = [adj1, adj2]                               # returned as-is (torch parity)

    B, T, IN = text.shape
    OUT = params['weight'].shape[1]

    # --- batch-block selection -------------------------------------------------
    bb = max(1, min(block_batch, B))
    if B >= 2:
        # Keep >=2 grid steps so v7x megacore (2 TCs) gets balanced work.
        bb = min(bb, pl.cdiv(B, 2))
    B_pad = pl.cdiv(B, bb) * bb
    grid = B_pad // bb

    # Pad the batch instead of degrading bb (keeps (bb*T)-row MXU matmuls and
    # amortizes the per-grid-step overhead).  Padded rows have zero mask/adj and
    # are sliced off afterwards.
    if B_pad != B:
        pad = B_pad - B
        text = jnp.pad(text, ((0, pad), (0, 0), (0, 0)))
        adj1 = jnp.pad(adj1, ((0, pad), (0, 0), (0, 0)))
        adj2 = jnp.pad(adj2, ((0, pad), (0, 0), (0, 0)))
        textmask = jnp.pad(textmask, ((0, pad), (0, 0)))

    # Compact bf16 adjacency transport (0/1 is exact in bf16) -> halves the
    # dominant DMA and gives the MXU a native-rate operand.
    adj1_c = adj1.astype(jnp.bfloat16)
    adj2_c = adj2.astype(jnp.bfloat16)
    text_f = text.astype(jnp.float32)
    mcol = textmask[:, :, None].astype(jnp.float32)    # (B_pad, T, 1)
    mrow = textmask[:, None, :].astype(jnp.float32)    # (B_pad, 1, T)

    # --- VMEM budget (double-buffered inputs/outputs + live temporaries) -------
    f32b, bf16b = 4, 2
    act = bb * T * OUT * f32b
    est = (2 * (bb * T * IN * f32b + 2 * bb * T * T * bf16b + 2 * bb * T * f32b)
           + 2 * (bb * T * 2 * OUT * f32b)
           + (IN * OUT + 2 * OUT * OUT + 3 * OUT) * f32b
           + bb * T * T * bf16b + 2 * bb * T * T * f32b
           + 8 * act)
    vmem_limit = int(min(max(est * 3 // 2, 32 * 1024 * 1024), 64 * 1024 * 1024))

    bcast2 = lambda b: (0, 0)

    out = pl.pallas_call(
        _gcn_align_kernel,
        out_shape=jax.ShapeDtypeStruct((B_pad, T, 2 * OUT), jnp.float32),
        grid_spec=pltpu.PrefetchScalarGridSpec(
            num_scalar_prefetch=0,
            grid=(grid,),
            in_specs=[
                pl.BlockSpec((bb, T, IN), lambda b: (b, 0, 0)),   # text
                pl.BlockSpec((bb, T, T), lambda b: (b, 0, 0)),    # adj1 (bf16)
                pl.BlockSpec((bb, T, T), lambda b: (b, 0, 0)),    # adj2 (bf16)
                pl.BlockSpec((bb, T, 1), lambda b: (b, 0, 0)),    # mask col
                pl.BlockSpec((bb, 1, T), lambda b: (b, 0, 0)),    # mask row
                pl.BlockSpec((IN, OUT), bcast2),                  # weight
                pl.BlockSpec((OUT, OUT), bcast2),                 # linear.weight.T
                pl.BlockSpec((1, OUT), bcast2),                   # layernorm gamma
                pl.BlockSpec((1, OUT), bcast2),                   # layernorm beta
                pl.BlockSpec((OUT, OUT), bcast2),                 # align.linear.weight.T
                pl.BlockSpec((1, OUT), bcast2),                   # align.bias
            ],
            out_specs=pl.BlockSpec((bb, T, 2 * OUT), lambda b: (b, 0, 0)),
        ),
        compiler_params=pltpu.CompilerParams(
            # Batch blocks are fully independent -> shard across TCs on v7x.
            dimension_semantics=("parallel",),
            vmem_limit_bytes=vmem_limit),
    )(text_f, adj1_c, adj2_c, mcol, mrow,
      params['weight'], params['lin_wt'],
      params['gamma'][None, :], params['beta'][None, :],
      params['al_lin_wt'], params['al_bias'][None, :])

    if B_pad != B:
        out = out[:B]
    return out, attss


def init_params(key, in_features, out_features, edge_size):
    ks = jax.random.split(key, 6)
    scale = 1.0 / jnp.sqrt(out_features)
    return dict(
        weight=jax.random.normal(ks[0], (in_features, out_features), jnp.float32) * 0.1,
        # stored pre-transposed so the kernel does x @ W.T as x @ lin_wt
        lin_wt=jax.random.normal(ks[1], (out_features, out_features), jnp.float32) * scale,
        gamma=jnp.full((out_features,), 0.2, jnp.float32),
        beta=jax.random.normal(ks[2], (out_features,), jnp.float32) * 0.01,
        al_lin_wt=jax.random.normal(ks[3], (out_features, out_features), jnp.float32)
                  * (0.5 * scale),
        al_bias=jax.random.normal(ks[4], (out_features,), jnp.float32) * 0.1,
        # kept for parameter parity with the torch module; unused in forward
        edge_vocab=jax.random.normal(ks[5], (edge_size, out_features), jnp.float32) * 0.1,
    )


def _reference_forward(params, text, adj1, adj2, textmask):
    """Pure-JAX f32 reference mirroring the torch forward (eval mode)."""
    IN = text.shape[-1]
    OUT = params['weight'].shape[1]
    adj = adj1.astype(jnp.float32) + adj2.astype(jnp.float32)
    adj = jnp.where(adj >= 1.0, 1.0, adj)
    if IN != OUT:                                   # matches the torch static branch
        output = jnp.maximum(text @ params['weight'], 0.0)
    else:
        output = text
    denom = jnp.sum(adj, axis=-1, keepdims=True) + 1.0
    for _ in range(K):
        outs = output
        teout = output @ params['lin_wt']
        h = jnp.maximum(jnp.einsum('btk,bkd->btd', adj, teout) / denom, 0.0)
        mu = jnp.mean(h, -1, keepdims=True)
        var = jnp.mean((h - mu) ** 2, -1, keepdims=True)
        hn = (h - mu) / jnp.sqrt(var + LN_EPS) * params['gamma'] + params['beta']
        output = hn + outs
    outs1 = output
    q = output @ params['al_lin_wt']
    logits = jnp.einsum('bqd,bkd->bqk', q, output)
    logits = logits + (1.0 - textmask[:, None, :]) * (-1e20)
    p = jax.nn.softmax(logits, -1)
    al = jnp.einsum('bqk,bkd->bqd', p, output) * textmask[:, :, None] + params['al_bias']
    return jnp.concatenate([al, outs1], -1)


if __name__ == "__main__":
    B, T, IN, OUT, EDGE = 4, 8, 16, 32, 10
    key = jax.random.PRNGKey(0)
    kp, k1, k2, k3, k4, k5 = jax.random.split(key, 6)

    params = init_params(kp, IN, OUT, EDGE)

    text = jax.random.normal(k1, (B, T, IN), jnp.float32)
    adj1 = (jax.random.uniform(k2, (B, T, T)) > 0.5).astype(jnp.bfloat16)
    adj2 = (jax.random.uniform(k3, (B, T, T)) > 0.5).astype(jnp.bfloat16)
    edge1 = jax.random.randint(k4, (B, T, T), 0, 4)
    edge2 = jax.random.randint(k5, (B, T, T), 0, 4)
    textmask = jnp.concatenate(
        [jnp.ones((B, T - 2), jnp.float32), jnp.zeros((B, 2), jnp.float32)], axis=-1)

    out, attss = simple_gcn_alignment_nohete(
        params, text, adj1, adj2, edge1, edge2, textmask, block_batch=2)
    out = jax.block_until_ready(out)

    ref = _reference_forward(params, text, adj1, adj2, textmask)
    assert out.shape == (B, T, 2 * OUT)
    # bf16 MXU operands (f32 accumulation) introduce ~0.2-0.4% relative rounding
    # that compounds through 3 residual hops + softmax -> 2e-2 tolerance.
    assert jnp.allclose(out, ref, rtol=2e-2, atol=2e-2), "mismatch vs JAX reference"

    print("KERNEL_OK")
</pallas_src>

<mosaic_0001>
module attributes {stable_mosaic.version = 11 : i64} {
  func.func @_gcn_align_kernel(%arg0: i32, %arg1: memref<2x8x16xf32, #tpu.memory_space<vmem>>, %arg2: memref<2x8x8xbf16, #tpu.memory_space<vmem>>, %arg3: memref<2x8x8xbf16, #tpu.memory_space<vmem>>, %arg4: memref<2x8x1xf32, #tpu.memory_space<vmem>>, %arg5: memref<2x1x8xf32, #tpu.memory_space<vmem>>, %arg6: memref<16x32xf32, #tpu.memory_space<vmem>>, %arg7: memref<32x32xf32, #tpu.memory_space<vmem>>, %arg8: memref<1x32xf32, #tpu.memory_space<vmem>>, %arg9: memref<1x32xf32, #tpu.memory_space<vmem>>, %arg10: memref<32x32xf32, #tpu.memory_space<vmem>>, %arg11: memref<1x32xf32, #tpu.memory_space<vmem>>, %arg12: memref<2x8x64xf32, #tpu.memory_space<vmem>>) attributes {dimension_semantics = [#tpu.dimension_semantics<parallel>], iteration_bounds = array<i64: 2>, scalar_prefetch = 0 : i64, scratch_operands = 0 : i64, tpu.core_type = #tpu.core_type<tc>, window_params = [{transform_indices = @transform_0, window_bounds = array<i64: 2, 8, 16>}, {transform_indices = @transform_1, window_bounds = array<i64: 2, 8, 8>}, {transform_indices = @transform_2, window_bounds = array<i64: 2, 8, 8>}, {transform_indices = @transform_3, window_bounds = array<i64: 2, 8, 1>}, {transform_indices = @transform_4, window_bounds = array<i64: 2, 1, 8>}, {pipeline_mode = #tpu.pipeline_mode<synchronous>, transform_indices = @transform_5, window_bounds = array<i64: 16, 32>}, {pipeline_mode = #tpu.pipeline_mode<synchronous>, transform_indices = @transform_6, window_bounds = array<i64: 32, 32>}, {pipeline_mode = #tpu.pipeline_mode<synchronous>, transform_indices = @transform_7, window_bounds = array<i64: 1, 32>}, {pipeline_mode = #tpu.pipeline_mode<synchronous>, transform_indices = @transform_8, window_bounds = array<i64: 1, 32>}, {pipeline_mode = #tpu.pipeline_mode<synchronous>, transform_indices = @transform_9, window_bounds = array<i64: 32, 32>}, {pipeline_mode = #tpu.pipeline_mode<synchronous>, transform_indices = @transform_10, window_bounds = array<i64: 1, 32>}, {transform_indices = @transform_11, window_bounds = array<i64: 2, 8, 64>}]} {
    %c0 = arith.constant 0 : index
    %c0_0 = arith.constant 0 : index
    %c0_1 = arith.constant 0 : index
    %0 = vector.load %arg2[%c0, %c0_0, %c0_1] : memref<2x8x8xbf16, #tpu.memory_space<vmem>>, vector<2x8x8xbf16>
    %c0_2 = arith.constant 0 : index
    %c0_3 = arith.constant 0 : index
    %c0_4 = arith.constant 0 : index
    %1 = vector.load %arg3[%c0_2, %c0_3, %c0_4] : memref<2x8x8xbf16, #tpu.memory_space<vmem>>, vector<2x8x8xbf16>
    %2 = arith.maximumf %0, %1 : vector<2x8x8xbf16>
    %3 = arith.extf %2 : vector<2x8x8xbf16> to vector<2x8x8xf32>
    %cst = arith.constant dense<0.000000e+00> : vector<2x8xf32>
    %4 = vector.multi_reduction <add>, %3, %cst [2] : vector<2x8x8xf32> to vector<2x8xf32>
    %5 = vector.shape_cast %4 : vector<2x8xf32> to vector<2x8x1xf32>
    %cst_5 = arith.constant 1.000000e+00 : f32
    %6 = vector.broadcast %cst_5 : f32 to vector<2x8x1xf32>
    %7 = arith.addf %5, %6 : vector<2x8x1xf32>
    %cst_6 = arith.constant 1.000000e+00 : f32
    %8 = vector.broadcast %cst_6 : f32 to vector<2x8x1xf32>
    %9 = arith.divf %8, %7 : vector<2x8x1xf32>
    %c0_7 = arith.constant 0 : index
    %c0_8 = arith.constant 0 : index
    %c0_9 = arith.constant 0 : index
    %10 = vector.load %arg1[%c0_7, %c0_8, %c0_9] : memref<2x8x16xf32, #tpu.memory_space<vmem>>, vector<2x8x16xf32>
    %11 = arith.truncf %10 : vector<2x8x16xf32> to vector<2x8x16xbf16>
    %12 = vector.shape_cast %11 : vector<2x8x16xbf16> to vector<16x16xbf16>
    %c0_10 = arith.constant 0 : index
    %c0_11 = arith.constant 0 : index
    %13 = vector.load %arg6[%c0_10, %c0_11] : memref<16x32xf32, #tpu.memory_space<vmem>>, vector<16x32xf32>
    %14 = arith.truncf %13 : vector<16x32xf32> to vector<16x32xbf16>
    %cst_12 = arith.constant dense<0.000000e+00> : vector<16x32xf32>
    %15 = tpu.matmul %12, %14, %cst_12 {dimension_numbers = #tpu.dot_dimension_numbers<[1], [0], [0], [1], [0, 0, 1, 1], [], []>} : vector<16x16xbf16>, vector<16x32xbf16>, vector<16x32xf32> -> vector<16x32xf32>
    %cst_13 = arith.constant 0.000000e+00 : f32
    %16 = vector.broadcast %cst_13 : f32 to vector<16x32xf32>
    %17 = arith.maximumf %15, %16 : vector<16x32xf32>
    %18 = vector.shape_cast %17 : vector<16x32xf32> to vector<2x8x32xf32>
    %c0_14 = arith.constant 0 : index
    %c0_15 = arith.constant 0 : index
    %19 = vector.load %arg8[%c0_14, %c0_15] : memref<1x32xf32, #tpu.memory_space<vmem>>, vector<1x32xf32>
    %c0_16 = arith.constant 0 : index
    %c0_17 = arith.constant 0 : index
    %20 = vector.load %arg9[%c0_16, %c0_17] : memref<1x32xf32, #tpu.memory_space<vmem>>, vector<1x32xf32>
    %c0_18 = arith.constant 0 : index
    %c0_19 = arith.constant 0 : index
    %21 = vector.load %arg7[%c0_18, %c0_19] : memref<32x32xf32, #tpu.memory_space<vmem>>, vector<32x32xf32>
    %22 = arith.truncf %21 : vector<32x32xf32> to vector<32x32xbf16>
    %23 = arith.truncf %18 : vector<2x8x32xf32> to vector<2x8x32xbf16>
    %24 = vector.shape_cast %23 : vector<2x8x32xbf16> to vector<16x32xbf16>
    %cst_20 = arith.constant dense<0.000000e+00> : vector<16x32xf32>
    %25 = tpu.matmul %24, %22, %cst_20 {dimension_numbers = #tpu.dot_dimension_numbers<[1], [0], [0], [1], [0, 0, 1, 1], [], []>} : vector<16x32xbf16>, vector<32x32xbf16>, vector<16x32xf32> -> vector<16x32xf32>
    %26 = arith.truncf %25 : vector<16x32xf32> to vector<16x32xbf16>
    %27 = vector.shape_cast %26 : vector<16x32xbf16> to vector<2x8x32xbf16>
    "tpu.trace_start"() <{level = 10 : i32, message = "bij,bjd->bid"}> : () -> ()
    %cst_21 = arith.constant dense<0.000000e+00> : vector<2x8x32xf32>
    %28 = tpu.matmul %2, %27, %cst_21 {dimension_numbers = #tpu.dot_dimension_numbers<[2], [1], [1], [2], [0, 0, 0, 1, 1, 2], [0], [0]>} : vector<2x8x8xbf16>, vector<2x8x32xbf16>, vector<2x8x32xf32> -> vector<2x8x32xf32>
    "tpu.trace_stop"() : () -> ()
    %cst_22 = arith.constant 0.000000e+00 : f32
    %29 = vector.broadcast %cst_22 : f32 to vector<2x8x32xf32>
    %30 = arith.maximumf %28, %29 : vector<2x8x32xf32>
    %31 = vector.broadcast %9 : vector<2x8x1xf32> to vector<2x8x32xf32>
    %32 = arith.mulf %30, %31 : vector<2x8x32xf32>
    %cst_23 = arith.constant dense<0.000000e+00> : vector<2x8xf32>
    %33 = vector.multi_reduction <add>, %32, %cst_23 [2] : vector<2x8x32xf32> to vector<2x8xf32>
    %34 = vector.shape_cast %33 : vector<2x8xf32> to vector<2x8x1xf32>
    %cst_24 = arith.constant 3.200000e+01 : f32
    %35 = vector.broadcast %cst_24 : f32 to vector<2x8x1xf32>
    %36 = arith.divf %34, %35 : vector<2x8x1xf32>
    %37 = vector.broadcast %36 : vector<2x8x1xf32> to vector<2x8x32xf32>
    %38 = arith.subf %32, %37 : vector<2x8x32xf32>
    %39 = vector.broadcast %36 : vector<2x8x1xf32> to vector<2x8x32xf32>
    %40 = arith.subf %32, %39 : vector<2x8x32xf32>
    %41 = arith.mulf %38, %40 : vector<2x8x32xf32>
    %cst_25 = arith.constant dense<0.000000e+00> : vector<2x8xf32>
    %42 = vector.multi_reduction <add>, %41, %cst_25 [2] : vector<2x8x32xf32> to vector<2x8xf32>
    %43 = vector.shape_cast %42 : vector<2x8xf32> to vector<2x8x1xf32>
    %cst_26 = arith.constant 3.200000e+01 : f32
    %44 = vector.broadcast %cst_26 : f32 to vector<2x8x1xf32>
    %45 = arith.divf %43, %44 : vector<2x8x1xf32>
    %46 = vector.broadcast %36 : vector<2x8x1xf32> to vector<2x8x32xf32>
    %47 = arith.subf %32, %46 : vector<2x8x32xf32>
    %cst_27 = arith.constant 9.99999974E-6 : f32
    %48 = vector.broadcast %cst_27 : f32 to vector<2x8x1xf32>
    %49 = arith.addf %45, %48 : vector<2x8x1xf32>
    %50 = math.rsqrt %49 : vector<2x8x1xf32>
    %51 = vector.broadcast %50 : vector<2x8x1xf32> to vector<2x8x32xf32>
    %52 = arith.mulf %47, %51 : vector<2x8x32xf32>
    %53 = vector.shape_cast %19 : vector<1x32xf32> to vector<1x1x32xf32>
    %54 = vector.broadcast %53 : vector<1x1x32xf32> to vector<2x8x32xf32>
    %55 = arith.mulf %52, %54 : vector<2x8x32xf32>
    %56 = vector.shape_cast %20 : vector<1x32xf32> to vector<1x1x32xf32>
    %57 = vector.broadcast %56 : vector<1x1x32xf32> to vector<2x8x32xf32>
    %58 = arith.addf %55, %57 : vector<2x8x32xf32>
    %59 = arith.addf %58, %18 : vector<2x8x32xf32>
    %60 = arith.truncf %59 : vector<2x8x32xf32> to vector<2x8x32xbf16>
    %61 = vector.shape_cast %60 : vector<2x8x32xbf16> to vector<16x32xbf16>
    %cst_28 = arith.constant dense<0.000000e+00> : vector<16x32xf32>
    %62 = tpu.matmul %61, %22, %cst_28 {dimension_numbers = #tpu.dot_dimension_numbers<[1], [0], [0], [1], [0, 0, 1, 1], [], []>} : vector<16x32xbf16>, vector<32x32xbf16>, vector<16x32xf32> -> vector<16x32xf32>
    %63 = arith.truncf %62 : vector<16x32xf32> to vector<16x32xbf16>
    %64 = vector.shape_cast %63 : vector<16x32xbf16> to vector<2x8x32xbf16>
    "tpu.trace_start"() <{level = 10 : i32, message = "bij,bjd->bid"}> : () -> ()
    %cst_29 = arith.constant dense<0.000000e+00> : vector<2x8x32xf32>
    %65 = tpu.matmul %2, %64, %cst_29 {dimension_numbers = #tpu.dot_dimension_numbers<[2], [1], [1], [2], [0, 0, 0, 1, 1, 2], [0], [0]>} : vector<2x8x8xbf16>, vector<2x8x32xbf16>, vector<2x8x32xf32> -> vector<2x8x32xf32>
    "tpu.trace_stop"() : () -> ()
    %cst_30 = arith.constant 0.000000e+00 : f32
    %66 = vector.broadcast %cst_30 : f32 to vector<2x8x32xf32>
    %67 = arith.maximumf %65, %66 : vector<2x8x32xf32>
    %68 = vector.broadcast %9 : vector<2x8x1xf32> to vector<2x8x32xf32>
    %69 = arith.mulf %67, %68 : vector<2x8x32xf32>
    %cst_31 = arith.constant dense<0.000000e+00> : vector<2x8xf32>
    %70 = vector.multi_reduction <add>, %69, %cst_31 [2] : vector<2x8x32xf32> to vector<2x8xf32>
    %71 = vector.shape_cast %70 : vector<2x8xf32> to vector<2x8x1xf32>
    %cst_32 = arith.constant 3.200000e+01 : f32
    %72 = vector.broadcast %cst_32 : f32 to vector<2x8x1xf32>
    %73 = arith.divf %71, %72 : vector<2x8x1xf32>
    %74 = vector.broadcast %73 : vector<2x8x1xf32> to vector<2x8x32xf32>
    %75 = arith.subf %69, %74 : vector<2x8x32xf32>
    %76 = vector.broadcast %73 : vector<2x8x1xf32> to vector<2x8x32xf32>
    %77 = arith.subf %69, %76 : vector<2x8x32xf32>
    %78 = arith.mulf %75, %77 : vector<2x8x32xf32>
    %cst_33 = arith.constant dense<0.000000e+00> : vector<2x8xf32>
    %79 = vector.multi_reduction <add>, %78, %cst_33 [2] : vector<2x8x32xf32> to vector<2x8xf32>
    %80 = vector.shape_cast %79 : vector<2x8xf32> to vector<2x8x1xf32>
    %cst_34 = arith.constant 3.200000e+01 : f32
    %81 = vector.broadcast %cst_34 : f32 to vector<2x8x1xf32>
    %82 = arith.divf %80, %81 : vector<2x8x1xf32>
    %83 = vector.broadcast %73 : vector<2x8x1xf32> to vector<2x8x32xf32>
    %84 = arith.subf %69, %83 : vector<2x8x32xf32>
    %cst_35 = arith.constant 9.99999974E-6 : f32
    %85 = vector.broadcast %cst_35 : f32 to vector<2x8x1xf32>
    %86 = arith.addf %82, %85 : vector<2x8x1xf32>
    %87 = math.rsqrt %86 : vector<2x8x1xf32>
    %88 = vector.broadcast %87 : vector<2x8x1xf32> to vector<2x8x32xf32>
    %89 = arith.mulf %84, %88 : vector<2x8x32xf32>
    %90 = vector.shape_cast %19 : vector<1x32xf32> to vector<1x1x32xf32>
    %91 = vector.broadcast %90 : vector<1x1x32xf32> to vector<2x8x32xf32>
    %92 = arith.mulf %89, %91 : vector<2x8x32xf32>
    %93 = vector.shape_cast %20 : vector<1x32xf32> to vector<1x1x32xf32>
    %94 = vector.broadcast %93 : vector<1x1x32xf32> to vector<2x8x32xf32>
    %95 = arith.addf %92, %94 : vector<2x8x32xf32>
    %96 = arith.addf %95, %59 : vector<2x8x32xf32>
    %97 = arith.truncf %96 : vector<2x8x32xf32> to vector<2x8x32xbf16>
    %98 = vector.shape_cast %97 : vector<2x8x32xbf16> to vector<16x32xbf16>
    %cst_36 = arith.constant dense<0.000000e+00> : vector<16x32xf32>
    %99 = tpu.matmul %98, %22, %cst_36 {dimension_numbers = #tpu.dot_dimension_numbers<[1], [0], [0], [1], [0, 0, 1, 1], [], []>} : vector<16x32xbf16>, vector<32x32xbf16>, vector<16x32xf32> -> vector<16x32xf32>
    %100 = arith.truncf %99 : vector<16x32xf32> to vector<16x32xbf16>
    %101 = vector.shape_cast %100 : vector<16x32xbf16> to vector<2x8x32xbf16>
    "tpu.trace_start"() <{level = 10 : i32, message = "bij,bjd->bid"}> : () -> ()
    %cst_37 = arith.constant dense<0.000000e+00> : vector<2x8x32xf32>
    %102 = tpu.matmul %2, %101, %cst_37 {dimension_numbers = #tpu.dot_dimension_numbers<[2], [1], [1], [2], [0, 0, 0, 1, 1, 2], [0], [0]>} : vector<2x8x8xbf16>, vector<2x8x32xbf16>, vector<2x8x32xf32> -> vector<2x8x32xf32>
    "tpu.trace_stop"() : () -> ()
    %cst_38 = arith.constant 0.000000e+00 : f32
    %103 = vector.broadcast %cst_38 : f32 to vector<2x8x32xf32>
    %104 = arith.maximumf %102, %103 : vector<2x8x32xf32>
    %105 = vector.broadcast %9 : vector<2x8x1xf32> to vector<2x8x32xf32>
    %106 = arith.mulf %104, %105 : vector<2x8x32xf32>
    %cst_39 = arith.constant dense<0.000000e+00> : vector<2x8xf32>
    %107 = vector.multi_reduction <add>, %106, %cst_39 [2] : vector<2x8x32xf32> to vector<2x8xf32>
    %108 = vector.shape_cast %107 : vector<2x8xf32> to vector<2x8x1xf32>
    %cst_40 = arith.constant 3.200000e+01 : f32
    %109 = vector.broadcast %cst_40 : f32 to vector<2x8x1xf32>
    %110 = arith.divf %108, %109 : vector<2x8x1xf32>
    %111 = vector.broadcast %110 : vector<2x8x1xf32> to vector<2x8x32xf32>
    %112 = arith.subf %106, %111 : vector<2x8x32xf32>
    %113 = vector.broadcast %110 : vector<2x8x1xf32> to vector<2x8x32xf32>
    %114 = arith.subf %106, %113 : vector<2x8x32xf32>
    %115 = arith.mulf %112, %114 : vector<2x8x32xf32>
    %cst_41 = arith.constant dense<0.000000e+00> : vector<2x8xf32>
    %116 = vector.multi_reduction <add>, %115, %cst_41 [2] : vector<2x8x32xf32> to vector<2x8xf32>
    %117 = vector.shape_cast %116 : vector<2x8xf32> to vector<2x8x1xf32>
    %cst_42 = arith.constant 3.200000e+01 : f32
    %118 = vector.broadcast %cst_42 : f32 to vector<2x8x1xf32>
    %119 = arith.divf %117, %118 : vector<2x8x1xf32>
    %120 = vector.broadcast %110 : vector<2x8x1xf32> to vector<2x8x32xf32>
    %121 = arith.subf %106, %120 : vector<2x8x32xf32>
    %cst_43 = arith.constant 9.99999974E-6 : f32
    %122 = vector.broadcast %cst_43 : f32 to vector<2x8x1xf32>
    %123 = arith.addf %119, %122 : vector<2x8x1xf32>
    %124 = math.rsqrt %123 : vector<2x8x1xf32>
    %125 = vector.broadcast %124 : vector<2x8x1xf32> to vector<2x8x32xf32>
    %126 = arith.mulf %121, %125 : vector<2x8x32xf32>
    %127 = vector.shape_cast %19 : vector<1x32xf32> to vector<1x1x32xf32>
    %128 = vector.broadcast %127 : vector<1x1x32xf32> to vector<2x8x32xf32>
    %129 = arith.mulf %126, %128 : vector<2x8x32xf32>
    %130 = vector.shape_cast %20 : vector<1x32xf32> to vector<1x1x32xf32>
    %131 = vector.broadcast %130 : vector<1x1x32xf32> to vector<2x8x32xf32>
    %132 = arith.addf %129, %131 : vector<2x8x32xf32>
    %133 = arith.addf %132, %96 : vector<2x8x32xf32>
    %134 = arith.truncf %133 : vector<2x8x32xf32> to vector<2x8x32xbf16>
    %135 = vector.shape_cast %134 : vector<2x8x32xbf16> to vector<16x32xbf16>
    %c0_44 = arith.constant 0 : index
    %c0_45 = arith.constant 0 : index
    %136 = vector.load %arg10[%c0_44, %c0_45] : memref<32x32xf32, #tpu.memory_space<vmem>>, vector<32x32xf32>
    %137 = arith.truncf %136 : vector<32x32xf32> to vector<32x32xbf16>
    %cst_46 = arith.constant dense<0.000000e+00> : vector<16x32xf32>
    %138 = tpu.matmul %135, %137, %cst_46 {dimension_numbers = #tpu.dot_dimension_numbers<[1], [0], [0], [1], [0, 0, 1, 1], [], []>} : vector<16x32xbf16>, vector<32x32xbf16>, vector<16x32xf32> -> vector<16x32xf32>
    %139 = vector.shape_cast %138 : vector<16x32xf32> to vector<2x8x32xf32>
    %140 = arith.truncf %139 : vector<2x8x32xf32> to vector<2x8x32xbf16>
    "tpu.trace_start"() <{level = 10 : i32, message = "bqd,bkd->bqk"}> : () -> ()
    %cst_47 = arith.constant dense<0.000000e+00> : vector<2x8x8xf32>
    %141 = tpu.matmul %140, %134, %cst_47 {dimension_numbers = #tpu.dot_dimension_numbers<[2], [2], [1], [1], [0, 0, 0, 1, 1, 1], [0], [0]>} : vector<2x8x32xbf16>, vector<2x8x32xbf16>, vector<2x8x8xf32> -> vector<2x8x8xf32>
    "tpu.trace_stop"() : () -> ()
    %c0_48 = arith.constant 0 : index
    %c0_49 = arith.constant 0 : index
    %c0_50 = arith.constant 0 : index
    %142 = vector.load %arg5[%c0_48, %c0_49, %c0_50] : memref<2x1x8xf32, #tpu.memory_space<vmem>>, vector<2x1x8xf32>
    %cst_51 = arith.constant 1.000000e+00 : f32
    %143 = vector.broadcast %cst_51 : f32 to vector<2x1x8xf32>
    %144 = arith.subf %143, %142 : vector<2x1x8xf32>
    %cst_52 = arith.constant -1.000000e+20 : f32
    %145 = vector.broadcast %cst_52 : f32 to vector<2x1x8xf32>
    %146 = arith.mulf %144, %145 : vector<2x1x8xf32>
    %147 = vector.broadcast %146 : vector<2x1x8xf32> to vector<2x8x8xf32>
    %148 = arith.addf %141, %147 : vector<2x8x8xf32>
    %cst_53 = arith.constant dense<0xFF800000> : vector<2x8xf32>
    %149 = vector.multi_reduction <maximumf>, %148, %cst_53 [2] : vector<2x8x8xf32> to vector<2x8xf32>
    %150 = vector.shape_cast %149 : vector<2x8xf32> to vector<2x8x1xf32>
    %151 = vector.broadcast %150 : vector<2x8x1xf32> to vector<2x8x8xf32>
    %152 = arith.subf %148, %151 : vector<2x8x8xf32>
    %153 = math.exp %152 : vector<2x8x8xf32>
    %cst_54 = arith.constant dense<0.000000e+00> : vector<2x8xf32>
    %154 = vector.multi_reduction <add>, %153, %cst_54 [2] : vector<2x8x8xf32> to vector<2x8xf32>
    %155 = vector.shape_cast %154 : vector<2x8xf32> to vector<2x8x1xf32>
    %156 = tpu.reciprocal %155 {approx = true} : vector<2x8x1xf32> -> vector<2x8x1xf32>
    %157 = vector.broadcast %156 : vector<2x8x1xf32> to vector<2x8x8xf32>
    %158 = arith.mulf %153, %157 : vector<2x8x8xf32>
    %159 = arith.truncf %158 : vector<2x8x8xf32> to vector<2x8x8xbf16>
    "tpu.trace_start"() <{level = 10 : i32, message = "bqk,bkd->bqd"}> : () -> ()
    %cst_55 = arith.constant dense<0.000000e+00> : vector<2x8x32xf32>
    %160 = tpu.matmul %159, %134, %cst_55 {dimension_numbers = #tpu.dot_dimension_numbers<[2], [1], [1], [2], [0, 0, 0, 1, 1, 2], [0], [0]>} : vector<2x8x8xbf16>, vector<2x8x32xbf16>, vector<2x8x32xf32> -> vector<2x8x32xf32>
    "tpu.trace_stop"() : () -> ()
    %c0_56 = arith.constant 0 : index
    %c0_57 = arith.constant 0 : index
    %c0_58 = arith.constant 0 : index
    %161 = vector.load %arg4[%c0_56, %c0_57, %c0_58] : memref<2x8x1xf32, #tpu.memory_space<vmem>>, vector<2x8x1xf32>
    %162 = vector.broadcast %161 : vector<2x8x1xf32> to vector<2x8x32xf32>
    %163 = arith.mulf %160, %162 : vector<2x8x32xf32>
    %c0_59 = arith.constant 0 : index
    %c0_60 = arith.constant 0 : index
    %164 = vector.load %arg11[%c0_59, %c0_60] : memref<1x32xf32, #tpu.memory_space<vmem>>, vector<1x32xf32>
    %165 = vector.shape_cast %164 : vector<1x32xf32> to vector<1x1x32xf32>
    %166 = vector.broadcast %165 : vector<1x1x32xf32> to vector<2x8x32xf32>
    %167 = arith.addf %163, %166 : vector<2x8x32xf32>
    %c0_61 = arith.constant 0 : index
    %c0_62 = arith.constant 0 : index
    %c0_63 = arith.constant 0 : index
    %168 = vector.load %arg12[%c0_61, %c0_62, %c0_63] : memref<2x8x64xf32, #tpu.memory_space<vmem>>, vector<2x8x32xf32>
    tpu.vector_store %arg12[%c0_61, %c0_62, %c0_63], %167 {strides = array<i32>} : memref<2x8x64xf32, #tpu.memory_space<vmem>>, vector<2x8x32xf32>,
    %c0_64 = arith.constant 0 : index
    %c0_65 = arith.constant 0 : index
    %c32 = arith.constant 32 : index
    %169 = vector.load %arg12[%c0_64, %c0_65, %c32] : memref<2x8x64xf32, #tpu.memory_space<vmem>>, vector<2x8x32xf32>
    tpu.vector_store %arg12[%c0_64, %c0_65, %c32], %133 {strides = array<i32>} : memref<2x8x64xf32, #tpu.memory_space<vmem>>, vector<2x8x32xf32>,
    return
  }
  func.func @transform_0(%arg0: i32) -> (i32, i32, i32) {
    %c0_i32 = arith.constant 0 : i32
    %c0_i32_0 = arith.constant 0 : i32
    %c0_i32_1 = arith.constant 0 : i32
    return %arg0, %c0_i32, %c0_i32_0 : i32, i32, i32
  }
  func.func @transform_1(%arg0: i32) -> (i32, i32, i32) {
    %c0_i32 = arith.constant 0 : i32
    %c0_i32_0 = arith.constant 0 : i32
    %c0_i32_1 = arith.constant 0 : i32
    return %arg0, %c0_i32, %c0_i32_0 : i32, i32, i32
  }
  func.func @transform_2(%arg0: i32) -> (i32, i32, i32) {
    %c0_i32 = arith.constant 0 : i32
    %c0_i32_0 = arith.constant 0 : i32
    %c0_i32_1 = arith.constant 0 : i32
    return %arg0, %c0_i32, %c0_i32_0 : i32, i32, i32
  }
  func.func @transform_3(%arg0: i32) -> (i32, i32, i32) {
    %c0_i32 = arith.constant 0 : i32
    %c0_i32_0 = arith.constant 0 : i32
    %c0_i32_1 = arith.constant 0 : i32
    return %arg0, %c0_i32, %c0_i32_0 : i32, i32, i32
  }
  func.func @transform_4(%arg0: i32) -> (i32, i32, i32) {
    %c0_i32 = arith.constant 0 : i32
    %c0_i32_0 = arith.constant 0 : i32
    %c0_i32_1 = arith.constant 0 : i32
    return %arg0, %c0_i32, %c0_i32_0 : i32, i32, i32
  }
  func.func @transform_5(%arg0: i32) -> (i32, i32) {
    %c0_i32 = arith.constant 0 : i32
    %c0_i32_0 = arith.constant 0 : i32
    %c0_i32_1 = arith.constant 0 : i32
    return %c0_i32, %c0_i32_0 : i32, i32
  }
  func.func @transform_6(%arg0: i32) -> (i32, i32) {
    %c0_i32 = arith.constant 0 : i32
    %c0_i32_0 = arith.constant 0 : i32
    %c0_i32_1 = arith.constant 0 : i32
    return %c0_i32, %c0_i32_0 : i32, i32
  }
  func.func @transform_7(%arg0: i32) -> (i32, i32) {
    %c0_i32 = arith.constant 0 : i32
    %c0_i32_0 = arith.constant 0 : i32
    %c0_i32_1 = arith.constant 0 : i32
    return %c0_i32, %c0_i32_0 : i32, i32
  }
  func.func @transform_8(%arg0: i32) -> (i32, i32) {
    %c0_i32 = arith.constant 0 : i32
    %c0_i32_0 = arith.constant 0 : i32
    %c0_i32_1 = arith.constant 0 : i32
    return %c0_i32, %c0_i32_0 : i32, i32
  }
  func.func @transform_9(%arg0: i32) -> (i32, i32) {
    %c0_i32 = arith.constant 0 : i32
    %c0_i32_0 = arith.constant 0 : i32
    %c0_i32_1 = arith.constant 0 : i32
    return %c0_i32, %c0_i32_0 : i32, i32
  }
  func.func @transform_10(%arg0: i32) -> (i32, i32) {
    %c0_i32 = arith.constant 0 : i32
    %c0_i32_0 = arith.constant 0 : i32
    %c0_i32_1 = arith.constant 0 : i32
    return %c0_i32, %c0_i32_0 : i32, i32
  }
  func.func @transform_11(%arg0: i32) -> (i32, i32, i32) {
    %c0_i32 = arith.constant 0 : i32
    %c0_i32_0 = arith.constant 0 : i32
    %c0_i32_1 = arith.constant 0 : i32
    return %arg0, %c0_i32, %c0_i32_0 : i32, i32, i32
  }
}

</mosaic_0001>

<llo_original>
// kernel: tpu_custom_call.1
$region0: #{tpu_custom_call.1}
  #allocation0 [shape = 'u32[]', space=smem, size = 0x4, offset = 0x4, fixed_abs, tag = 'smem constant byte address 0x4 - core index']
  #allocation1 [shape = 'u32[72,128]{1,0:T(1,128)}', space=vmem, size = 0x9000, scoped, tag = 'internal scratch']
  %s0 = inlined_call_operand.vmem [shape: f32[4,8,16], index: 0, kind: input, shape index: {}]
  %s1 = inlined_call_operand.hbm [shape: bf16[4,8,8], index: 1, kind: input, shape index: {}]
  %s2 = inlined_call_operand.hbm [shape: bf16[4,8,8], index: 2, kind: input, shape index: {}]
  %s3 = inlined_call_operand.vmem [shape: f32[4,8,1], index: 3, kind: input, shape index: {}]
  %s4 = inlined_call_operand.vmem [shape: f32[4,1,8], index: 4, kind: input, shape index: {}]
  %s5 = inlined_call_operand.hbm [shape: f32[16,32], index: 5, kind: input, shape index: {}]
  %s6 = inlined_call_operand.hbm [shape: f32[32,32], index: 6, kind: input, shape index: {}]
  %s7 = inlined_call_operand.vmem [shape: f32[1,32], index: 7, kind: input, shape index: {}]
  %s8 = inlined_call_operand.vmem [shape: f32[1,32], index: 8, kind: input, shape index: {}]
  %s9 = inlined_call_operand.hbm [shape: f32[32,32], index: 9, kind: input, shape index: {}]
  %s10 = inlined_call_operand.vmem [shape: f32[1,32], index: 10, kind: input, shape index: {}]
  %s11 = inlined_call_operand.hbm [shape: f32[4,8,64], index: 11, kind: output, shape index: {}]
  %s12 = sld [smem:[#allocation0]]
  $region97: #{tpu_custom_call.1} parent=0
    _
  %s14 = ssub.s32 1, %s12
  %s15 = scalar_select 0, %s14, %s12
  $region1: #{tpu_custom_call.1} parent=0
    #allocation2 [shape = 'u8[8192]{0}', space=vmem, size = 0x2000, scoped, tag = 'input window, operand 1']
    #allocation3 [shape = 's32[2]{0}', space=sflag, size = 0x8, scoped, tag = 'scoped memory for tpu_custom_call.1']
    #allocation4 [shape = 's32[2]{0}', space=sflag, size = 0x8, scoped, tag = 'scoped memory for tpu_custom_call.1']
    #allocation5 [shape = 'u8[8192]{0}', space=vmem, size = 0x2000, scoped, tag = 'input window, operand 2']
    #allocation6 [shape = 's32[2]{0}', space=sflag, size = 0x8, scoped, tag = 'scoped memory for tpu_custom_call.1']
    #allocation7 [shape = 'u8[8192]{0}', space=vmem, size = 0x2000, scoped, tag = 'input window, operand 5, single buffered']
    #allocation8 [shape = 'u8[16384]{0}', space=vmem, size = 0x4000, scoped, tag = 'input window, operand 6, single buffered']
    #allocation9 [shape = 's32[1]{0}', space=sflag, size = 0x4, scoped, tag = 'scoped memory for tpu_custom_call.1']
    #allocation10 [shape = 'u8[16384]{0}', space=vmem, size = 0x4000, scoped, tag = 'input window, operand 9, single buffered']
    #allocation11 [shape = 'u8[16384]{0}', space=vmem, size = 0x4000, scoped, tag = 'output window, operand 0']
    %16 = vsyncpa [#allocation3], 0
    %s17 = scalar_lea.sflag [#allocation3], 1
    %18 = vsyncpa %s17, 0
    %19 = vsyncpa [#allocation6], 0
    %s20 = scalar_lea.sflag [#allocation6], 1
    %21 = vsyncpa %s20, 0
    %22 = vsyncpa [#allocation9], 0
    %23 = vsyncpa [#allocation4], 0
    %s24 = scalar_lea.sflag [#allocation4], 1
    %25 = vsyncpa %s24, 0
    loop: start=0, step=1, limit=4
    $region2: #{tpu_custom_call.1} parent=1 // loop_pre_header
      _
    $region3: #{tpu_custom_call.1} parent=1 // loop_header
      %s27 = sphi 0, %s31
      %p28 = scmp.ge.s32.totalorder %s27, 4
      %s37 = sphi 0, %s39
      %s40 = sphi 0, %s37
      %s41 = sphi 0, %s40
      %s57 = sphi 0, %s41
      %s63 = sphi 0, %s65
      %s66 = sphi 0, %s63
      %s67 = sphi 0, %s66
      %s83 = sphi 0, %s67
      %s89 = sphi 0, %s91
      %s92 = sphi 0, %s89
      %s93 = sphi 0, %s92
      %s109 = sphi 0, %s93
      %s115 = sphi 0, %s117
      %s118 = sphi 0, %s115
      %s119 = sphi 0, %s118
      %s135 = sphi 0, %s119
      %s141 = sphi 0, %s143
      %s144 = sphi 0, %s141
      %s145 = sphi 0, %s144
      %s161 = sphi 0, %s145
      %s165 = sphi 0, %s165
      %s167 = sphi 0, %s165
      %s168 = sphi 0, %s167
      %s182 = sphi 0, %s168
      %s186 = sphi 0, %s186
      %s188 = sphi 0, %s186
      %s189 = sphi 0, %s188
      %s203 = sphi 0, %s189
      %s207 = sphi 0, %s207
      %s209 = sphi 0, %s207
      %s210 = sphi 0, %s209
      %s224 = sphi 0, %s210
      %s228 = sphi 0, %s228
      %s230 = sphi 0, %s228
      %s231 = sphi 0, %s230
      %s245 = sphi 0, %s231
      %s249 = sphi 0, %s249
      %s251 = sphi 0, %s249
      %s252 = sphi 0, %s251
      %s266 = sphi 0, %s252
      %s270 = sphi 0, %s270
      %s272 = sphi 0, %s270
      %s273 = sphi 0, %s272
      %s287 = sphi 0, %s273
      %s293 = sphi 0, %s295
      %s296 = sphi 0, %s293
      %s297 = sphi 0, %s296
      %s313 = sphi 0, %s297
    $region4: #{tpu_custom_call.1} parent=1 // loop_header_branch
      %30 = sbr.rel (%p28) target = $region8
    $region5: #{tpu_custom_call.1} parent=1 // loop_body
      %s32 = ssub.s32 %s27, 1
      %s33 = ssub.s32 %s27, 2
      %s34 = sadd.s32 %s27, 1
      %s35 = ssub.s32 %s27, %s34
      %p36 = scmp.eq.s32.totalorder %s35, 0
      %s38 = sadd.s32 %s37, 1
      %s39 = scalar_select %p36, %s37, %s38
      %p42 = pneg %p36
      %p43 = scmp.eq.s32.totalorder %s27, 1
      %p44 = por %p42, %p43
      %p45 = scmp.ne.s32.totalorder %s37, %s40
      %p46 = scmp.eq.s32.totalorder %s27, 0
      %p47 = por %p45, %p46
      %p48 = scmp.ne.s32.totalorder %s37, %s40
      %p49 = scmp.eq.s32.totalorder %s32, 1
      %p50 = por %p48, %p49
      %p51 = scmp.ne.s32.totalorder %s40, %s41
      %p52 = scmp.eq.s32.totalorder %s32, 0
      %p53 = por %p51, %p52
      %p54 = scmp.ne.s32.totalorder %s40, %s41
      %p55 = scmp.eq.s32.totalorder %s33, 1
      %p56 = por %p54, %p55
      %p58 = scmp.ne.s32.totalorder %s41, %s57
      %p59 = scmp.eq.s32.totalorder %s33, 0
      %p60 = por %p58, %p59
      %s61 = ssub.s32 %s27, %s34
      %p62 = scmp.eq.s32.totalorder %s61, 0
      %s64 = sadd.s32 %s63, 1
      %s65 = scalar_select %p62, %s63, %s64
      %p68 = pneg %p62
      %p69 = scmp.eq.s32.totalorder %s27, 1
      %p70 = por %p68, %p69
      %p71 = scmp.ne.s32.totalorder %s63, %s66
      %p72 = scmp.eq.s32.totalorder %s27, 0
      %p73 = por %p71, %p72
      %p74 = scmp.ne.s32.totalorder %s63, %s66
      %p75 = scmp.eq.s32.totalorder %s32, 1
      %p76 = por %p74, %p75
      %p77 = scmp.ne.s32.totalorder %s66, %s67
      %p78 = scmp.eq.s32.totalorder %s32, 0
      %p79 = por %p77, %p78
      %p80 = scmp.ne.s32.totalorder %s66, %s67
      %p81 = scmp.eq.s32.totalorder %s33, 1
      %p82 = por %p80, %p81
      %p84 = scmp.ne.s32.totalorder %s67, %s83
      %p85 = scmp.eq.s32.totalorder %s33, 0
      %p86 = por %p84, %p85
      %s87 = ssub.s32 %s27, %s34
      %p88 = scmp.eq.s32.totalorder %s87, 0
      %s90 = sadd.s32 %s89, 1
      %s91 = scalar_select %p88, %s89, %s90
      %p94 = pneg %p88
      %p95 = scmp.eq.s32.totalorder %s27, 1
      %p96 = por %p94, %p95
      %p97 = scmp.ne.s32.totalorder %s89, %s92
      %p98 = scmp.eq.s32.totalorder %s27, 0
      %p99 = por %p97, %p98
      %p100 = scmp.ne.s32.totalorder %s89, %s92
      %p101 = scmp.eq.s32.totalorder %s32, 1
      %p102 = por %p100, %p101
      %p103 = scmp.ne.s32.totalorder %s92, %s93
      %p104 = scmp.eq.s32.totalorder %s32, 0
      %p105 = por %p103, %p104
      %p106 = scmp.ne.s32.totalorder %s92, %s93
      %p107 = scmp.eq.s32.totalorder %s33, 1
      %p108 = por %p106, %p107
      %p110 = scmp.ne.s32.totalorder %s93, %s109
      %p111 = scmp.eq.s32.totalorder %s33, 0
      %p112 = por %p110, %p111
      %s113 = ssub.s32 %s27, %s34
      %p114 = scmp.eq.s32.totalorder %s113, 0
      %s116 = sadd.s32 %s115, 1
      %s117 = scalar_select %p114, %s115, %s116
      %p120 = pneg %p114
      %p121 = scmp.eq.s32.totalorder %s27, 1
      %p122 = por %p120, %p121
      %p123 = scmp.ne.s32.totalorder %s115, %s118
      %p124 = scmp.eq.s32.totalorder %s27, 0
      %p125 = por %p123, %p124
      %p126 = scmp.ne.s32.totalorder %s115, %s118
      %p127 = scmp.eq.s32.totalorder %s32, 1
      %p128 = por %p126, %p127
      %p129 = scmp.ne.s32.totalorder %s118, %s119
      %p130 = scmp.eq.s32.totalorder %s32, 0
      %p131 = por %p129, %p130
      %p132 = scmp.ne.s32.totalorder %s118, %s119
      %p133 = scmp.eq.s32.totalorder %s33, 1
      %p134 = por %p132, %p133
      %p136 = scmp.ne.s32.totalorder %s119, %s135
      %p137 = scmp.eq.s32.totalorder %s33, 0
      %p138 = por %p136, %p137
      %s139 = ssub.s32 %s27, %s34
      %p140 = scmp.eq.s32.totalorder %s139, 0
      %s142 = sadd.s32 %s141, 1
      %s143 = scalar_select %p140, %s141, %s142
      %p146 = pneg %p140
      %p147 = scmp.eq.s32.totalorder %s27, 1
      %p148 = por %p146, %p147
      %p149 = scmp.ne.s32.totalorder %s141, %s144
      %p150 = scmp.eq.s32.totalorder %s27, 0
      %p151 = por %p149, %p150
      %p152 = scmp.ne.s32.totalorder %s141, %s144
      %p153 = scmp.eq.s32.totalorder %s32, 1
      %p154 = por %p152, %p153
      %p155 = scmp.ne.s32.totalorder %s144, %s145
      %p156 = scmp.eq.s32.totalorder %s32, 0
      %p157 = por %p155, %p156
      %p158 = scmp.ne.s32.totalorder %s144, %s145
      %p159 = scmp.eq.s32.totalorder %s33, 1
      %p160 = por %p158, %p159
      %p162 = scmp.ne.s32.totalorder %s145, %s161
      %p163 = scmp.eq.s32.totalorder %s33, 0
      %p164 = por %p162, %p163
      %s166 = sadd.s32 %s165, 1
      %p169 = scmp.eq.s32.totalorder %s27, 1
      %p170 = scmp.ne.s32.totalorder %s165, %s167
      %p171 = scmp.eq.s32.totalorder %s27, 0
      %p172 = por %p170, %p171
      %p173 = scmp.ne.s32.totalorder %s165, %s167
      %p174 = scmp.eq.s32.totalorder %s32, 1
      %p175 = por %p173, %p174
      %p176 = scmp.ne.s32.totalorder %s167, %s168
      %p177 = scmp.eq.s32.totalorder %s32, 0
      %p178 = por %p176, %p177
      %p179 = scmp.ne.s32.totalorder %s167, %s168
      %p180 = scmp.eq.s32.totalorder %s33, 1
      %p181 = por %p179, %p180
      %p183 = scmp.ne.s32.totalorder %s168, %s182
      %p184 = scmp.eq.s32.totalorder %s33, 0
      %p185 = por %p183, %p184
      %s187 = sadd.s32 %s186, 1
      %p190 = scmp.eq.s32.totalorder %s27, 1
      %p191 = scmp.ne.s32.totalorder %s186, %s188
      %p192 = scmp.eq.s32.totalorder %s27, 0
      %p193 = por %p191, %p192
      %p194 = scmp.ne.s32.totalorder %s186, %s188
      %p195 = scmp.eq.s32.totalorder %s32, 1
      %p196 = por %p194, %p195
      %p197 = scmp.ne.s32.totalorder %s188, %s189
      %p198 = scmp.eq.s32.totalorder %s32, 0
      %p199 = por %p197, %p198
      %p200 = scmp.ne.s32.totalorder %s188, %s189
      %p201 = scmp.eq.s32.totalorder %s33, 1
      %p202 = por %p200, %p201
      %p204 = scmp.ne.s32.totalorder %s189, %s203
      %p205 = scmp.eq.s32.totalorder %s33, 0
      %p206 = por %p204, %p205
      %s208 = sadd.s32 %s207, 1
      %p211 = scmp.eq.s32.totalorder %s27, 1
      %p212 = scmp.ne.s32.totalorder %s207, %s209
      %p213 = scmp.eq.s32.totalorder %s27, 0
      %p214 = por %p212, %p213
      %p215 = scmp.ne.s32.totalorder %s207, %s209
      %p216 = scmp.eq.s32.totalorder %s32, 1
      %p217 = por %p215, %p216
      %p218 = scmp.ne.s32.totalorder %s209, %s210
      %p219 = scmp.eq.s32.totalorder %s32, 0
      %p220 = por %p218, %p219
      %p221 = scmp.ne.s32.totalorder %s209, %s210
      %p222 = scmp.eq.s32.totalorder %s33, 1
      %p223 = por %p221, %p222
      %p225 = scmp.ne.s32.totalorder %s210, %s224
      %p226 = scmp.eq.s32.totalorder %s33, 0
      %p227 = por %p225, %p226
      %s229 = sadd.s32 %s228, 1
      %p232 = scmp.eq.s32.totalorder %s27, 1
      %p233 = scmp.ne.s32.totalorder %s228, %s230
      %p234 = scmp.eq.s32.totalorder %s27, 0
      %p235 = por %p233, %p234
      %p236 = scmp.ne.s32.totalorder %s228, %s230
      %p237 = scmp.eq.s32.totalorder %s32, 1
      %p238 = por %p236, %p237
      %p239 = scmp.ne.s32.totalorder %s230, %s231
      %p240 = scmp.eq.s32.totalorder %s32, 0
      %p241 = por %p239, %p240
      %p242 = scmp.ne.s32.totalorder %s230, %s231
      %p243 = scmp.eq.s32.totalorder %s33, 1
      %p244 = por %p242, %p243
      %p246 = scmp.ne.s32.totalorder %s231, %s245
      %p247 = scmp.eq.s32.totalorder %s33, 0
      %p248 = por %p246, %p247
      %s250 = sadd.s32 %s249, 1
      %p253 = scmp.eq.s32.totalorder %s27, 1
      %p254 = scmp.ne.s32.totalorder %s249, %s251
      %p255 = scmp.eq.s32.totalorder %s27, 0
      %p256 = por %p254, %p255
      %p257 = scmp.ne.s32.totalorder %s249, %s251
      %p258 = scmp.eq.s32.totalorder %s32, 1
      %p259 = por %p257, %p258
      %p260 = scmp.ne.s32.totalorder %s251, %s252
      %p261 = scmp.eq.s32.totalorder %s32, 0
      %p262 = por %p260, %p261
      %p263 = scmp.ne.s32.totalorder %s251, %s252
      %p264 = scmp.eq.s32.totalorder %s33, 1
      %p265 = por %p263, %p264
      %p267 = scmp.ne.s32.totalorder %s252, %s266
      %p268 = scmp.eq.s32.totalorder %s33, 0
      %p269 = por %p267, %p268
      %s271 = sadd.s32 %s270, 1
      %p274 = scmp.eq.s32.totalorder %s27, 1
      %p275 = scmp.ne.s32.totalorder %s270, %s272
      %p276 = scmp.eq.s32.totalorder %s27, 0
      %p277 = por %p275, %p276
      %p278 = scmp.ne.s32.totalorder %s270, %s272
      %p279 = scmp.eq.s32.totalorder %s32, 1
      %p280 = por %p278, %p279
      %p281 = scmp.ne.s32.totalorder %s272, %s273
      %p282 = scmp.eq.s32.totalorder %s32, 0
      %p283 = por %p281, %p282
      %p284 = scmp.ne.s32.totalorder %s272, %s273
      %p285 = scmp.eq.s32.totalorder %s33, 1
      %p286 = por %p284, %p285
      %p288 = scmp.ne.s32.totalorder %s273, %s287
      %p289 = scmp.eq.s32.totalorder %s33, 0
      %p290 = por %p288, %p289
      %s291 = ssub.s32 %s27, %s34
      %p292 = scmp.eq.s32.totalorder %s291, 0
      %s294 = sadd.s32 %s293, 1
      %s295 = scalar_select %p292, %s293, %s294
      %p298 = pneg %p292
      %p299 = scmp.eq.s32.totalorder %s27, 1
      %p300 = por %p298, %p299
      %p301 = scmp.ne.s32.totalorder %s293, %s296
      %p302 = scmp.eq.s32.totalorder %s27, 0
      %p303 = por %p301, %p302
      %p304 = scmp.ne.s32.totalorder %s293, %s296
      %p305 = scmp.eq.s32.totalorder %s32, 1
      %p306 = por %p304, %p305
      %p307 = scmp.ne.s32.totalorder %s296, %s297
      %p308 = scmp.eq.s32.totalorder %s32, 0
      %p309 = por %p307, %p308
      %p310 = scmp.ne.s32.totalorder %s296, %s297
      %p311 = scmp.eq.s32.totalorder %s33, 1
      %p312 = por %p310, %p311
      %p314 = scmp.ne.s32.totalorder %s297, %s313
      %p315 = scmp.eq.s32.totalorder %s33, 0
      %p316 = por %p314, %p315
      %p317 = scmp.le.s32.totalorder 1, %s27
      %p318 = scmp.lt.s32.totalorder %s27, 3
      %p319 = pnand %p317, %p318
      %p320 = pneg %p319
      // Predicated region
      $region9: #{tpu_custom_call.1} parent=5 // pred_check
        _
      $region10: #{tpu_custom_call.1} parent=5 // pred_check_branch
        %322 = sbr.rel (%p319) target = $region12
      $region11: #{tpu_custom_call.1} parent=5 // pred_region
        %s323 = ssub.s32 %s27, 1
        // Predicated region
        $region13: #{tpu_custom_call.1} parent=11 // pred_check
          %p324 = pneg %p178
        $region14: #{tpu_custom_call.1} parent=11 // pred_check_branch
          %326 = sbr.rel (%p324) target = $region16
        $region15: #{tpu_custom_call.1} parent=11 // pred_region
          %328 = vsyncadd [#allocation6], 0
          %s329 = sshll.u32 %s5, 4
          %s330 = int_to_ptr.hbm [resolvable:$true] %s329
          %s331 = sshll.u32 [#allocation7], 4
          %s332 = int_to_ptr.vmem [resolvable:$true] %s331
          %337 = dma.hbm_to_vmem [thread:$0]  %s330, 256, %s332, [#allocation6], 128, 128, 8
        $region16: #{tpu_custom_call.1} parent=11 // pred_fallthru
          _
        // Predicated region
        $region17: #{tpu_custom_call.1} parent=11 // pred_check
          %p338 = pneg %p199
        $region18: #{tpu_custom_call.1} parent=11 // pred_check_branch
          %340 = sbr.rel (%p338) target = $region20
        $region19: #{tpu_custom_call.1} parent=11 // pred_region
          %342 = vsyncadd [#allocation9], 0
          %s343 = sshll.u32 %s6, 4
          %s344 = int_to_ptr.hbm [resolvable:$true] %s343
          %s345 = sshll.u32 [#allocation8], 4
          %s346 = int_to_ptr.vmem [resolvable:$true] %s345
          %351 = dma.hbm_to_vmem [thread:$0]  %s344, 512, %s346, [#allocation9], 128, 128, 8
        $region20: #{tpu_custom_call.1} parent=11 // pred_fallthru
          _
        // Predicated region
        $region21: #{tpu_custom_call.1} parent=11 // pred_check
          %p352 = pneg %p220
        $region22: #{tpu_custom_call.1} parent=11 // pred_check_branch
          %354 = sbr.rel (%p352) target = $region24
        $region23: #{tpu_custom_call.1} parent=11 // pred_region
          _
        $region24: #{tpu_custom_call.1} parent=11 // pred_fallthru
          _
        // Predicated region
        $region25: #{tpu_custom_call.1} parent=11 // pred_check
          %p355 = pneg %p241
        $region26: #{tpu_custom_call.1} parent=11 // pred_check_branch
          %357 = sbr.rel (%p355) target = $region28
        $region27: #{tpu_custom_call.1} parent=11 // pred_region
          _
        $region28: #{tpu_custom_call.1} parent=11 // pred_fallthru
          _
        // Predicated region
        $region29: #{tpu_custom_call.1} parent=11 // pred_check
          %p358 = pneg %p262
        $region30: #{tpu_custom_call.1} parent=11 // pred_check_branch
          %360 = sbr.rel (%p358) target = $region32
        $region31: #{tpu_custom_call.1} parent=11 // pred_region
          %362 = vsyncadd [#allocation9], 0
          %s363 = sshll.u32 %s9, 4
          %s364 = int_to_ptr.hbm [resolvable:$true] %s363
          %s365 = sshll.u32 [#allocation10], 4
          %s366 = int_to_ptr.vmem [resolvable:$true] %s365
          %371 = dma.hbm_to_vmem [thread:$0]  %s364, 512, %s366, [#allocation9], 128, 128, 8
        $region32: #{tpu_custom_call.1} parent=11 // pred_fallthru
          _
        // Predicated region
        $region33: #{tpu_custom_call.1} parent=11 // pred_check
          %p372 = pneg %p283
        $region34: #{tpu_custom_call.1} parent=11 // pred_check_branch
          %374 = sbr.rel (%p372) target = $region36
        $region35: #{tpu_custom_call.1} parent=11 // pred_region
          _
        $region36: #{tpu_custom_call.1} parent=11 // pred_fallthru
          _
      $region12: #{tpu_custom_call.1} parent=5 // pred_fallthru
        _
      %p375 = scmp.lt.s32.totalorder %s27, 2
      // Predicated region
      $region37: #{tpu_custom_call.1} parent=5 // pred_check
        %p376 = pneg %p375
      $region38: #{tpu_custom_call.1} parent=5 // pred_check_branch
        %378 = sbr.rel (%p376) target = $region40
      $region39: #{tpu_custom_call.1} parent=5 // pred_region
        // Predicated region
        $region41: #{tpu_custom_call.1} parent=39 // pred_check
          %p379 = pneg %p47
        $region42: #{tpu_custom_call.1} parent=39 // pred_check_branch
          %381 = sbr.rel (%p379) target = $region44
        $region43: #{tpu_custom_call.1} parent=39 // pred_region
          %s382 = smul.u32 2, %s27
          %p383 = scmp.lt.s32.totalorder %s382, 3
          %s384 = scalar_select %p383, %s382, 3
          %s385 = smul.addr %s384, 8
          %s386 = scalar_lea.vmem %s0, %s385
          %s387 = smul.u32 2, %s27
        $region44: #{tpu_custom_call.1} parent=39 // pred_fallthru
          _
        // Predicated region
        $region45: #{tpu_custom_call.1} parent=39 // pred_check
          %p388 = pneg %p73
        $region46: #{tpu_custom_call.1} parent=39 // pred_check_branch
          %390 = sbr.rel (%p388) target = $region48
        $region47: #{tpu_custom_call.1} parent=39 // pred_region
          %s391 = sand.u32 %s63, 1
          %s392 = scalar_lea.sflag [#allocation3], %s391
          %s393 = sand.u32 %s63, 1
          %s394 = smul.addr %s393, 8
          %s395 = scalar_lea.vmem [#allocation2], %s394
          %s396 = smul.u32 2, %s27
          %398 = vsyncadd %s392, 0
          %s399 = smul.addr %s396, 4
          %s400 = scalar_lea.hbm %s1, %s399
          %s401 = sshll.u32 %s400, 4
          %s402 = int_to_ptr.hbm [resolvable:$true] %s401
          %s403 = sshll.u32 %s395, 4
          %s404 = int_to_ptr.vmem [resolvable:$true] %s403
          %409 = dma.hbm_to_vmem [thread:$0]  %s402, 128, %s404, %s392, 64, 64, 4
        $region48: #{tpu_custom_call.1} parent=39 // pred_fallthru
          _
        // Predicated region
        $region49: #{tpu_custom_call.1} parent=39 // pred_check
          %p410 = pneg %p99
        $region50: #{tpu_custom_call.1} parent=39 // pred_check_branch
          %412 = sbr.rel (%p410) target = $region52
        $region51: #{tpu_custom_call.1} parent=39 // pred_region
          %s413 = sand.u32 %s27, 1
          %s414 = scalar_lea.sflag [#allocation6], %s413
          %s415 = sand.u32 %s89, 1
          %s416 = smul.addr %s415, 8
          %s417 = scalar_lea.vmem [#allocation5], %s416
          %s418 = smul.u32 2, %s27
          %420 = vsyncadd %s414, 0
          %s421 = smul.addr %s418, 4
          %s422 = scalar_lea.hbm %s2, %s421
          %s423 = sshll.u32 %s422, 4
          %s424 = int_to_ptr.hbm [resolvable:$true] %s423
          %s425 = sshll.u32 %s417, 4
          %s426 = int_to_ptr.vmem [resolvable:$true] %s425
          %431 = dma.hbm_to_vmem [thread:$0]  %s424, 128, %s426, %s414, 64, 64, 4
        $region52: #{tpu_custom_call.1} parent=39 // pred_fallthru
          _
        // Predicated region
        $region53: #{tpu_custom_call.1} parent=39 // pred_check
          %p432 = pneg %p125
        $region54: #{tpu_custom_call.1} parent=39 // pred_check_branch
          %434 = sbr.rel (%p432) target = $region56
        $region55: #{tpu_custom_call.1} parent=39 // pred_region
          %s435 = smul.u32 2, %s27
          %p436 = scmp.lt.s32.totalorder %s435, 3
          %s437 = scalar_select %p436, %s435, 3
          %s438 = smul.addr %s437, 8
          %s439 = scalar_lea.vmem %s3, %s438
          %s440 = smul.u32 2, %s27
        $region56: #{tpu_custom_call.1} parent=39 // pred_fallthru
          _
        // Predicated region
        $region57: #{tpu_custom_call.1} parent=39 // pred_check
          %p441 = pneg %p151
        $region58: #{tpu_custom_call.1} parent=39 // pred_check_branch
          %443 = sbr.rel (%p441) target = $region60
        $region59: #{tpu_custom_call.1} parent=39 // pred_region
          %s444 = smul.u32 2, %s27
          %p445 = scmp.lt.s32.totalorder %s444, 3
          %s446 = scalar_select %p445, %s444, 3
          %s447 = scalar_lea.vmem %s4, %s446
          %s448 = smul.u32 2, %s27
        $region60: #{tpu_custom_call.1} parent=39 // pred_fallthru
          _
      $region40: #{tpu_custom_call.1} parent=5 // pred_fallthru
        _
      %p449 = scmp.le.s32.totalorder 1, %s27
      %p450 = scmp.lt.s32.totalorder %s27, 3
      %p451 = pnand %p449, %p450
      %p452 = pneg %p451
      // Predicated region
      $region61: #{tpu_custom_call.1} parent=5 // pred_check
        _
      $region62: #{tpu_custom_call.1} parent=5 // pred_check_branch
        %454 = sbr.rel (%p451) target = $region64
      $region63: #{tpu_custom_call.1} parent=5 // pred_region
        %s455 = ssub.s32 %s27, 1
        %s456 = sand.u32 %s66, 1
        %s457 = scalar_lea.sflag [#allocation3], %s456
        %s458 = sand.u32 %s66, 1
        %s459 = smul.addr %s458, 8
        %s460 = scalar_lea.vmem [#allocation2], %s459
        // Predicated region
        $region65: #{tpu_custom_call.1} parent=63 // pred_check
          %p461 = pneg %p79
        $region66: #{tpu_custom_call.1} parent=63 // pred_check_branch
          %463 = sbr.rel (%p461) target = $region68
        $region67: #{tpu_custom_call.1} parent=63 // pred_region
          %465 = dma.done %s457, 128
        $region68: #{tpu_custom_call.1} parent=63 // pred_fallthru
          _
        %s466 = sand.u32 %s32, 1
        %s467 = scalar_lea.sflag [#allocation6], %s466
        %s468 = sand.u32 %s92, 1
        %s469 = smul.addr %s468, 8
        %s470 = scalar_lea.vmem [#allocation5], %s469
        // Predicated region
        $region69: #{tpu_custom_call.1} parent=63 // pred_check
          %p471 = pneg %p105
        $region70: #{tpu_custom_call.1} parent=63 // pred_check_branch
          %473 = sbr.rel (%p471) target = $region72
        $region71: #{tpu_custom_call.1} parent=63 // pred_region
          %475 = dma.done %s467, 128
        $region72: #{tpu_custom_call.1} parent=63 // pred_fallthru
          _
        // Predicated region
        $region73: #{tpu_custom_call.1} parent=63 // pred_check
          %p476 = pneg %p178
        $region74: #{tpu_custom_call.1} parent=63 // pred_check_branch
          %478 = sbr.rel (%p476) target = $region76
        $region75: #{tpu_custom_call.1} parent=63 // pred_region
          %480 = dma.done [#allocation6], 256
        $region76: #{tpu_custom_call.1} parent=63 // pred_fallthru
          _
        // Predicated region
        $region77: #{tpu_custom_call.1} parent=63 // pred_check
          %p481 = pneg %p199
        $region78: #{tpu_custom_call.1} parent=63 // pred_check_branch
          %483 = sbr.rel (%p481) target = $region80
        $region79: #{tpu_custom_call.1} parent=63 // pred_region
          %485 = dma.done [#allocation9], 512
        $region80: #{tpu_custom_call.1} parent=63 // pred_fallthru
          _
        // Predicated region
        $region81: #{tpu_custom_call.1} parent=63 // pred_check
          %p486 = pneg %p262
        $region82: #{tpu_custom_call.1} parent=63 // pred_check_branch
          %488 = sbr.rel (%p486) target = $region84
        $region83: #{tpu_custom_call.1} parent=63 // pred_region
          %490 = dma.done [#allocation9], 512
        $region84: #{tpu_custom_call.1} parent=63 // pred_fallthru
          _
        %s491 = smul.u32 2, %s32
        %p492 = scmp.lt.s32.totalorder %s491, 3
        %s493 = scalar_select %p492, %s491, 3
        %s494 = smul.addr %s493, 8
        %s495 = scalar_lea.vmem %s0, %s494
        %p496 = pneg %p53
        %p497 = pneg %p50
        %s498 = sand.u32 %s66, 1
        %s499 = scalar_lea.sflag [#allocation3], %s498
        %s500 = sand.u32 %s66, 1
        %s501 = smul.addr %s500, 8
        %s502 = scalar_lea.vmem [#allocation2], %s501
        %p503 = pneg %p79
        %p504 = pneg %p76
        %s505 = sand.u32 %s32, 1
        %s506 = scalar_lea.sflag [#allocation6], %s505
        %s507 = sand.u32 %s92, 1
        %s508 = smul.addr %s507, 8
        %s509 = scalar_lea.vmem [#allocation5], %s508
        %p510 = pneg %p105
        %p511 = pneg %p102
        %s512 = smul.u32 2, %s32
        %p513 = scmp.lt.s32.totalorder %s512, 3
        %s514 = scalar_select %p513, %s512, 3
        %s515 = smul.addr %s514, 8
        %s516 = scalar_lea.vmem %s3, %s515
        %p517 = pneg %p131
        %p518 = pneg %p128
        %s519 = smul.u32 2, %s32
        %p520 = scmp.lt.s32.totalorder %s519, 3
        %s521 = scalar_select %p520, %s519, 3
        %s522 = scalar_lea.vmem %s4, %s521
        %p523 = pneg %p157
        %p524 = pneg %p154
        %p525 = pneg %p178
        %p526 = pneg %p175
        %p527 = pneg %p199
        %p528 = pneg %p196
        %p529 = pneg %p220
        %p530 = pneg %p217
        %p531 = pneg %p241
        %p532 = pneg %p238
        %p533 = pneg %p262
        %p534 = pneg %p259
        %p535 = pneg %p283
        %p536 = pneg %p280
        %p537 = pneg %p309
        %p538 = pneg %p306
        %s539 = sand.u32 %s296, 1
        %s540 = scalar_lea.sflag [#allocation4], %s539
        %s541 = sand.u32 %s296, 1
        %s542 = smul.addr %s541, 16
        %s543 = scalar_lea.vmem [#allocation11], %s542
        %s544 = smul.u32 2, %s32
        %p545 = scmp.lt.s32.totalorder %s544, 3
        %s546 = scalar_select %p545, %s544, 3
        %s547 = smul.addr %s546, 8
        %s548 = scalar_lea.vmem %s0, %s547
        %s549 = smul.u32 2, %s32
        %s550 = smul.u32 2, %s32
        %s551 = smul.u32 2, %s32
        %s552 = smul.u32 2, %s32
        %p553 = scmp.lt.s32.totalorder %s552, 3
        %s554 = scalar_select %p553, %s552, 3
        %s555 = smul.addr %s554, 8
        %s556 = scalar_lea.vmem %s3, %s555
        %s557 = smul.u32 2, %s32
        %s558 = smul.u32 2, %s32
        %p559 = scmp.lt.s32.totalorder %s558, 3
        %s560 = scalar_select %p559, %s558, 3
        %s561 = scalar_lea.vmem %s4, %s560
        %s562 = smul.u32 2, %s32
        %s563 = smul.u32 2, %s32
        %v565 = vld [vmem:[%s460] sm:$0xf]
        %v566 = vld [vmem:[%s460 + $0x4] sm:$0xf]
        %v567 = vld [vmem:[%s470] sm:$0xf]
        %v568 = vld [vmem:[%s470 + $0x4] sm:$0xf]
        %v569 = vunpack.c.l.bf16 %v565
        %v570 = vunpack.c.l.bf16 %v566
        %v571 = vunpack.c.l.bf16 %v567
        %v572 = vunpack.c.l.bf16 %v568
        %v573 = vmax.f32 %v569, %v571
        %v574 = vmax.f32 %v570, %v572
        %v575 = vpack.c.bf16 %v573, %v573
        %v576 = vpack.c.bf16 %v574, %v574
        %v577 = vunpack.c.l.bf16 %v575
        %v578 = vunpack.c.l.bf16 %v576
        %vm579 = vcmask 64512
        %v580 = vsel %vm579, %v577, 0.0
        %581 = vadd.xlane.f32.xlu0 %v580
        %v582 = vpop.xlane.xlu0 %581
        %v583 = vsel %vm579, %v578, 0.0
        %584 = vadd.xlane.f32.xlu0 %v583
        %v585 = vpop.xlane.xlu0 %584
        %v586 = vadd.f32 %v582, 1.0
        %v587 = vadd.f32 %v585, 1.0
        %v588 = vrcp.pop %v586
        %v589 = vmul.f32 %v586, %v588
        %v590 = vsub.f32 1.0, %v589
        %v591 = vmul.f32 %v588, %v590
        %v592 = vadd.f32 %v588, %v591
        %vm593 = vweird.f32 %v586
        %vm594 = vweird.f32 %v588
        %vm595 = vmor %vm593, %vm594
        %v596 = vsel %vm595, %v588, %v592
        %v597 = vand.u32 2147483647, %v586
        %vm598 = vcmp.eq.f32.partialorder %v597, 8.507059e+37
        %v599 = vand.u32 %v586, 2147483648
        %v600 = vor.u32 1.1754944e-38, %v599
        %v601 = vsel %vm598, %v600, %v596
        %v602 = vmul.f32 1.0, %v601
        %v603 = vrcp.pop %v587
        %v604 = vmul.f32 %v587, %v603
        %v605 = vsub.f32 1.0, %v604
        %v606 = vmul.f32 %v603, %v605
        %v607 = vadd.f32 %v603, %v606
        %vm608 = vweird.f32 %v587
        %vm609 = vweird.f32 %v603
        %vm610 = vmor %vm608, %vm609
        %v611 = vsel %vm610, %v603, %v607
        %v612 = vand.u32 2147483647, %v587
        %vm613 = vcmp.eq.f32.partialorder %v612, 8.507059e+37
        %v614 = vand.u32 %v587, 2147483648
        %v615 = vor.u32 1.1754944e-38, %v614
        %v616 = vsel %vm613, %v615, %v611
        %v617 = vmul.f32 1.0, %v616
        %v618 = vld [vmem:[%s548] sm:$0xff]
        %v619 = vld [vmem:[%s548 + $0x8] sm:$0xff]
        %v620 = vpack.c.bf16 %v618, %v618
        %v621 = vpack.c.bf16 %v619, %v619
        %v622 = vld [vmem:[#allocation7] sm:$0xff]
        %v623 = vld [vmem:[#allocation7 + $0x8] sm:$0xff]
        %v624 = vpack.c.bf16 %v623, %v622
        %v627 = vunpack.c.l.b16 %v620
        %v628 = vunpack.c.l.b16 %v621
        %v629 = vpack.c.b16 %v628, %v627
        %vm630 = vcmask 130048
        %v632 = vsel %vm630, %v629, 0
        %634 = vmatpush.bf16.msra.mxu0 0
        %635 = vmatpush.bf16.msra.mxu0 0
        %636 = vmatpush.bf16.msra.mxu0 0
        %637 = vmatpush.bf16.msra.mxu0 0
        %638 = vmatpush.bf16.msra.mxu0 0
        %639 = vmatpush.bf16.msra.mxu0 0
        %640 = vmatpush.bf16.msra.mxu0 0
        %641 = vmatpush.bf16.msra.mxu0 %v624
        %642 = vmatmul.bf16.gmra.mxu0 %v632
        %v643 = vpop.f32.mrf.mxu0
        %v644 = vadd.f32 0.0, %v643
        %v645 = vpop.f32.mrf.mxu0
        %v646 = vadd.f32 0.0, %v645
        %647 = vdwg.mxu0
        %v648 = vmax.f32 %v644, 0.0
        %v649 = vmax.f32 %v646, 0.0
        %v650 = vld [vmem:[%s7] sm:$0x1]
        %v651 = vld [vmem:[%s8] sm:$0x1]
        %v652 = vld [vmem:[#allocation8] sm:$0xff]
        %v653 = vld [vmem:[#allocation8 + $0x8] sm:$0xff]
        %v654 = vld [vmem:[#allocation8 + $0x10] sm:$0xff]
        %v655 = vld [vmem:[#allocation8 + $0x18] sm:$0xff]
        %v656 = vpack.c.bf16 %v653, %v652
        %v657 = vpack.c.bf16 %v655, %v654
        %v658 = vpack.c.bf16 %v648, %v648
        %v659 = vpack.c.bf16 %v649, %v649
        %v662 = vunpack.c.l.b16 %v658
        %v663 = vunpack.c.l.b16 %v659
        %v664 = vpack.c.b16 %v663, %v662
        %vm665 = vcmask 261120
        %v667 = vsel %vm665, %v664, 0
        %669 = vmatpush.bf16.msra.mxu0 0
        %670 = vmatpush.bf16.msra.mxu0 0
        %671 = vmatpush.bf16.msra.mxu0 0
        %672 = vmatpush.bf16.msra.mxu0 0
        %673 = vmatpush.bf16.msra.mxu0 0
        %674 = vmatpush.bf16.msra.mxu0 0
        %675 = vmatpush.bf16.msra.mxu0 %v657
        %676 = vmatpush.bf16.msra.mxu0 %v656
        %677 = vmatmul.bf16.gmra.mxu0 %v667
        %v678 = vpop.f32.mrf.mxu0
        %v679 = vadd.f32 0.0, %v678
        %v680 = vpop.f32.mrf.mxu0
        %v681 = vadd.f32 0.0, %v680
        %682 = vdwg.mxu0
        %v683 = vpack.c.bf16 %v679, %v679
        %v684 = vpack.c.bf16 %v681, %v681
        %v686 = vsel %vm579, %v575, 0
        %vm688 = vcmask 1043456
        %v690 = vsel %vm688, %v683, 0
        %692 = vmatpush.bf16.msra.mxu0 0
        %693 = vmatpush.bf16.msra.mxu0 0
        %694 = vmatpush.bf16.msra.mxu0 0
        %695 = vmatpush.bf16.msra.mxu0 0
        %696 = vmatpush.bf16.msra.mxu0 0
        %697 = vmatpush.bf16.msra.mxu0 0
        %698 = vmatpush.bf16.msra.mxu0 0
        %699 = vmatpush.bf16.msra.mxu0 %v690
        %700 = vmatmul.bf16.gmra.mxu0 %v686
        %v701 = vpop.f32.mrf.mxu0
        %v702 = vadd.f32 0.0, %v701
        %v703 = vpop.f32.mrf.mxu0
        %704 = vdwg.mxu0
        %v706 = vsel %vm579, %v576, 0
        %v709 = vsel %vm688, %v684, 0
        %711 = vmatpush.bf16.msra.mxu0 0
        %712 = vmatpush.bf16.msra.mxu0 0
        %713 = vmatpush.bf16.msra.mxu0 0
        %714 = vmatpush.bf16.msra.mxu0 0
        %715 = vmatpush.bf16.msra.mxu0 0
        %716 = vmatpush.bf16.msra.mxu0 0
        %717 = vmatpush.bf16.msra.mxu0 0
        %718 = vmatpush.bf16.msra.mxu0 %v709
        %719 = vmatmul.bf16.gmra.mxu0 %v706
        %v720 = vpop.f32.mrf.mxu0
        %v721 = vadd.f32 0.0, %v720
        %v722 = vpop.f32.mrf.mxu0
        %723 = vdwg.mxu0
        %v724 = vmax.f32 %v702, 0.0
        %v725 = vmax.f32 %v721, 0.0
        %v726 = vmul.f32 %v724, %v602
        %v727 = vmul.f32 %v725, %v617
        %v728 = vsel %vm665, %v726, 0.0
        %729 = vadd.xlane.f32.xlu0 %v728
        %v730 = vpop.xlane.xlu0 %729
        %v731 = vsel %vm665, %v727, 0.0
        %732 = vadd.xlane.f32.xlu0 %v731
        %v733 = vpop.xlane.xlu0 %732
        %v734 = vrcp.pop 32.0
        %v735 = vmul.f32 32.0, %v734
        %v736 = vsub.f32 1.0, %v735
        %v737 = vmul.f32 %v734, %v736
        %v738 = vadd.f32 %v734, %v737
        %vm739 = vweird.f32 %v734
        %v740 = vsel %vm739, %v734, %v738
        %v741 = vmul.f32 %v730, %v740
        %v742 = vmul.f32 %v733, %v740
        %v743 = vsub.f32 %v726, %v741
        %v744 = vsub.f32 %v727, %v742
        %v745 = vmul.f32 %v743, %v743
        %v746 = vmul.f32 %v744, %v744
        %v747 = vsel %vm665, %v745, 0.0
        %748 = vadd.xlane.f32.xlu0 %v747
        %v749 = vpop.xlane.xlu0 %748
        %v750 = vsel %vm665, %v746, 0.0
        %751 = vadd.xlane.f32.xlu0 %v750
        %v752 = vpop.xlane.xlu0 %751
        %v753 = vmul.f32 %v749, %v740
        %v754 = vmul.f32 %v752, %v740
        %v755 = vadd.f32 %v753, 1e-05
        %v756 = vadd.f32 %v754, 1e-05
        %v757 = vrsqrt.pop %v755
        %v758 = vmul.f32 %v757, %v755
        %v759 = vmul.f32 %v758, %v757
        %v760 = vmul.f32 0.5, %v759
        %v761 = vsub.f32 1.5, %v760
        %v762 = vmul.f32 %v757, %v761
        %vm763 = vweird.f32 %v755
        %vm764 = vweird.f32 %v757
        %vm765 = vmor %vm763, %vm764
        %v766 = vsel %vm765, %v757, %v762
        %v767 = vrsqrt.pop %v756
        %v768 = vmul.f32 %v767, %v756
        %v769 = vmul.f32 %v768, %v767
        %v770 = vmul.f32 0.5, %v769
        %v771 = vsub.f32 1.5, %v770
        %v772 = vmul.f32 %v767, %v771
        %vm773 = vweird.f32 %v756
        %vm774 = vweird.f32 %v767
        %vm775 = vmor %vm773, %vm774
        %v776 = vsel %vm775, %v767, %v772
        %v777 = vmul.f32 %v743, %v766
        %v778 = vmul.f32 %v744, %v776
        %v780 = vperm.slane %v650, 0
        %v782 = vmul.f32 %v777, %v780
        %v783 = vmul.f32 %v778, %v780
        %v785 = vperm.slane %v651, 0
        %v787 = vadd.f32 %v782, %v785
        %v788 = vadd.f32 %v783, %v785
        %v789 = vadd.f32 %v787, %v648
        %v790 = vadd.f32 %v788, %v649
        %v791 = vpack.c.bf16 %v789, %v789
        %v792 = vpack.c.bf16 %v790, %v790
        %v795 = vunpack.c.l.b16 %v791
        %v796 = vunpack.c.l.b16 %v792
        %v797 = vpack.c.b16 %v796, %v795
        %v799 = vsel %vm665, %v797, 0
        %801 = vmatpush.bf16.msra.mxu0 0
        %802 = vmatpush.bf16.msra.mxu0 0
        %803 = vmatpush.bf16.msra.mxu0 0
        %804 = vmatpush.bf16.msra.mxu0 0
        %805 = vmatpush.bf16.msra.mxu0 0
        %806 = vmatpush.bf16.msra.mxu0 0
        %807 = vmatpush.bf16.msra.mxu0 %v657
        %808 = vmatpush.bf16.msra.mxu0 %v656
        %809 = vmatmul.bf16.gmra.mxu0 %v799
        %v810 = vpop.f32.mrf.mxu0
        %v811 = vadd.f32 0.0, %v810
        %v812 = vpop.f32.mrf.mxu0
        %v813 = vadd.f32 0.0, %v812
        %814 = vdwg.mxu0
        %v815 = vpack.c.bf16 %v811, %v811
        %v816 = vpack.c.bf16 %v813, %v813
        %v818 = vsel %vm688, %v815, 0
        %820 = vmatpush.bf16.msra.mxu0 0
        %821 = vmatpush.bf16.msra.mxu0 0
        %822 = vmatpush.bf16.msra.mxu0 0
        %823 = vmatpush.bf16.msra.mxu0 0
        %824 = vmatpush.bf16.msra.mxu0 0
        %825 = vmatpush.bf16.msra.mxu0 0
        %826 = vmatpush.bf16.msra.mxu0 0
        %827 = vmatpush.bf16.msra.mxu0 %v818
        %828 = vmatmul.bf16.gmra.mxu0 %v686
        %v829 = vpop.f32.mrf.mxu0
        %v830 = vadd.f32 0.0, %v829
        %v831 = vpop.f32.mrf.mxu0
        %832 = vdwg.mxu0
        %v834 = vsel %vm688, %v816, 0
        %836 = vmatpush.bf16.msra.mxu0 0
        %837 = vmatpush.bf16.msra.mxu0 0
        %838 = vmatpush.bf16.msra.mxu0 0
        %839 = vmatpush.bf16.msra.mxu0 0
        %840 = vmatpush.bf16.msra.mxu0 0
        %841 = vmatpush.bf16.msra.mxu0 0
        %842 = vmatpush.bf16.msra.mxu0 0
        %843 = vmatpush.bf16.msra.mxu0 %v834
        %844 = vmatmul.bf16.gmra.mxu0 %v706
        %v845 = vpop.f32.mrf.mxu0
        %v846 = vadd.f32 0.0, %v845
        %v847 = vpop.f32.mrf.mxu0
        %848 = vdwg.mxu0
        %v849 = vmax.f32 %v830, 0.0
        %v850 = vmax.f32 %v846, 0.0
        %v851 = vmul.f32 %v849, %v602
        %v852 = vmul.f32 %v850, %v617
        %v853 = vsel %vm665, %v851, 0.0
        %854 = vadd.xlane.f32.xlu0 %v853
        %v855 = vpop.xlane.xlu0 %854
        %v856 = vsel %vm665, %v852, 0.0
        %857 = vadd.xlane.f32.xlu0 %v856
        %v858 = vpop.xlane.xlu0 %857
        %v859 = vmul.f32 %v855, %v740
        %v860 = vmul.f32 %v858, %v740
        %v861 = vsub.f32 %v851, %v859
        %v862 = vsub.f32 %v852, %v860
        %v863 = vmul.f32 %v861, %v861
        %v864 = vmul.f32 %v862, %v862
        %v865 = vsel %vm665, %v863, 0.0
        %866 = vadd.xlane.f32.xlu0 %v865
        %v867 = vpop.xlane.xlu0 %866
        %v868 = vsel %vm665, %v864, 0.0
        %869 = vadd.xlane.f32.xlu0 %v868
        %v870 = vpop.xlane.xlu0 %869
        %v871 = vmul.f32 %v867, %v740
        %v872 = vmul.f32 %v870, %v740
        %v873 = vadd.f32 %v871, 1e-05
        %v874 = vadd.f32 %v872, 1e-05
        %v875 = vrsqrt.pop %v873
        %v876 = vmul.f32 %v875, %v873
        %v877 = vmul.f32 %v876, %v875
        %v878 = vmul.f32 0.5, %v877
        %v879 = vsub.f32 1.5, %v878
        %v880 = vmul.f32 %v875, %v879
        %vm881 = vweird.f32 %v873
        %vm882 = vweird.f32 %v875
        %vm883 = vmor %vm881, %vm882
        %v884 = vsel %vm883, %v875, %v880
        %v885 = vrsqrt.pop %v874
        %v886 = vmul.f32 %v885, %v874
        %v887 = vmul.f32 %v886, %v885
        %v888 = vmul.f32 0.5, %v887
        %v889 = vsub.f32 1.5, %v888
        %v890 = vmul.f32 %v885, %v889
        %vm891 = vweird.f32 %v874
        %vm892 = vweird.f32 %v885
        %vm893 = vmor %vm891, %vm892
        %v894 = vsel %vm893, %v885, %v890
        %v895 = vmul.f32 %v861, %v884
        %v896 = vmul.f32 %v862, %v894
        %v897 = vmul.f32 %v895, %v780
        %v898 = vmul.f32 %v896, %v780
        %v899 = vadd.f32 %v897, %v785
        %v900 = vadd.f32 %v898, %v785
        %v901 = vadd.f32 %v899, %v789
        %v902 = vadd.f32 %v900, %v790
        %v903 = vpack.c.bf16 %v901, %v901
        %v904 = vpack.c.bf16 %v902, %v902
        %v907 = vunpack.c.l.b16 %v903
        %v908 = vunpack.c.l.b16 %v904
        %v909 = vpack.c.b16 %v908, %v907
        %v911 = vsel %vm665, %v909, 0
        %913 = vmatpush.bf16.msra.mxu0 0
        %914 = vmatpush.bf16.msra.mxu0 0
        %915 = vmatpush.bf16.msra.mxu0 0
        %916 = vmatpush.bf16.msra.mxu0 0
        %917 = vmatpush.bf16.msra.mxu0 0
        %918 = vmatpush.bf16.msra.mxu0 0
        %919 = vmatpush.bf16.msra.mxu0 %v657
        %920 = vmatpush.bf16.msra.mxu0 %v656
        %921 = vmatmul.bf16.gmra.mxu0 %v911
        %v922 = vpop.f32.mrf.mxu0
        %v923 = vadd.f32 0.0, %v922
        %v924 = vpop.f32.mrf.mxu0
        %v925 = vadd.f32 0.0, %v924
        %926 = vdwg.mxu0
        %v927 = vpack.c.bf16 %v923, %v923
        %v928 = vpack.c.bf16 %v925, %v925
        %v930 = vsel %vm688, %v927, 0
        %932 = vmatpush.bf16.msra.mxu0 0
        %933 = vmatpush.bf16.msra.mxu0 0
        %934 = vmatpush.bf16.msra.mxu0 0
        %935 = vmatpush.bf16.msra.mxu0 0
        %936 = vmatpush.bf16.msra.mxu0 0
        %937 = vmatpush.bf16.msra.mxu0 0
        %938 = vmatpush.bf16.msra.mxu0 0
        %939 = vmatpush.bf16.msra.mxu0 %v930
        %940 = vmatmul.bf16.gmra.mxu0 %v686
        %v941 = vpop.f32.mrf.mxu0
        %v942 = vadd.f32 0.0, %v941
        %v943 = vpop.f32.mrf.mxu0
        %944 = vdwg.mxu0
        %v946 = vsel %vm688, %v928, 0
        %948 = vmatpush.bf16.msra.mxu0 0
        %949 = vmatpush.bf16.msra.mxu0 0
        %950 = vmatpush.bf16.msra.mxu0 0
        %951 = vmatpush.bf16.msra.mxu0 0
        %952 = vmatpush.bf16.msra.mxu0 0
        %953 = vmatpush.bf16.msra.mxu0 0
        %954 = vmatpush.bf16.msra.mxu0 0
        %955 = vmatpush.bf16.msra.mxu0 %v946
        %956 = vmatmul.bf16.gmra.mxu0 %v706
        %v957 = vpop.f32.mrf.mxu0
        %v958 = vadd.f32 0.0, %v957
        %v959 = vpop.f32.mrf.mxu0
        %960 = vdwg.mxu0
        %v961 = vmax.f32 %v942, 0.0
        %v962 = vmax.f32 %v958, 0.0
        %v963 = vmul.f32 %v961, %v602
        %v964 = vmul.f32 %v962, %v617
        %v965 = vsel %vm665, %v963, 0.0
        %966 = vadd.xlane.f32.xlu0 %v965
        %v967 = vpop.xlane.xlu0 %966
        %v968 = vsel %vm665, %v964, 0.0
        %969 = vadd.xlane.f32.xlu0 %v968
        %v970 = vpop.xlane.xlu0 %969
        %v971 = vmul.f32 %v967, %v740
        %v972 = vmul.f32 %v970, %v740
        %v973 = vsub.f32 %v963, %v971
        %v974 = vsub.f32 %v964, %v972
        %v975 = vmul.f32 %v973, %v973
        %v976 = vmul.f32 %v974, %v974
        %v977 = vsel %vm665, %v975, 0.0
        %978 = vadd.xlane.f32.xlu0 %v977
        %v979 = vpop.xlane.xlu0 %978
        %v980 = vsel %vm665, %v976, 0.0
        %981 = vadd.xlane.f32.xlu0 %v980
        %v982 = vpop.xlane.xlu0 %981
        %v983 = vmul.f32 %v979, %v740
        %v984 = vmul.f32 %v982, %v740
        %v985 = vadd.f32 %v983, 1e-05
        %v986 = vadd.f32 %v984, 1e-05
        %v987 = vrsqrt.pop %v985
        %v988 = vmul.f32 %v987, %v985
        %v989 = vmul.f32 %v988, %v987
        %v990 = vmul.f32 0.5, %v989
        %v991 = vsub.f32 1.5, %v990
        %v992 = vmul.f32 %v987, %v991
        %vm993 = vweird.f32 %v985
        %vm994 = vweird.f32 %v987
        %vm995 = vmor %vm993, %vm994
        %v996 = vsel %vm995, %v987, %v992
        %v997 = vrsqrt.pop %v986
        %v998 = vmul.f32 %v997, %v986
        %v999 = vmul.f32 %v998, %v997
        %v1000 = vmul.f32 0.5, %v999
        %v1001 = vsub.f32 1.5, %v1000
        %v1002 = vmul.f32 %v997, %v1001
        %vm1003 = vweird.f32 %v986
        %vm1004 = vweird.f32 %v997
        %vm1005 = vmor %vm1003, %vm1004
        %v1006 = vsel %vm1005, %v997, %v1002
        %v1007 = vmul.f32 %v973, %v996
        %v1008 = vmul.f32 %v974, %v1006
        %v1009 = vmul.f32 %v1007, %v780
        %v1010 = vmul.f32 %v1008, %v780
        %v1011 = vadd.f32 %v1009, %v785
        %v1012 = vadd.f32 %v1010, %v785
        %v1013 = vadd.f32 %v1011, %v901
        %v1014 = vadd.f32 %v1012, %v902
        %v1015 = vpack.c.bf16 %v1013, %v1013
        %v1016 = vpack.c.bf16 %v1014, %v1014
        %v1017 = vld [vmem:[#allocation10] sm:$0xff]
        %v1018 = vld [vmem:[#allocation10 + $0x8] sm:$0xff]
        %v1019 = vld [vmem:[#allocation10 + $0x10] sm:$0xff]
        %v1020 = vld [vmem:[#allocation10 + $0x18] sm:$0xff]
        %v1021 = vpack.c.bf16 %v1018, %v1017
        %v1022 = vpack.c.bf16 %v1020, %v1019
        %v1025 = vunpack.c.l.b16 %v1015
        %v1026 = vunpack.c.l.b16 %v1016
        %v1027 = vpack.c.b16 %v1026, %v1025
        %v1029 = vsel %vm665, %v1027, 0
        %1031 = vmatpush.bf16.msra.mxu0 0
        %1032 = vmatpush.bf16.msra.mxu0 0
        %1033 = vmatpush.bf16.msra.mxu0 0
        %1034 = vmatpush.bf16.msra.mxu0 0
        %1035 = vmatpush.bf16.msra.mxu0 0
        %1036 = vmatpush.bf16.msra.mxu0 0
        %1037 = vmatpush.bf16.msra.mxu0 %v1022
        %1038 = vmatpush.bf16.msra.mxu0 %v1021
        %1039 = vmatmul.bf16.gmra.mxu0 %v1029
        %v1040 = vpop.f32.mrf.mxu0
        %v1041 = vadd.f32 0.0, %v1040
        %v1042 = vpop.f32.mrf.mxu0
        %v1043 = vadd.f32 0.0, %v1042
        %1044 = vdwg.mxu0
        %v1045 = vpack.c.bf16 %v1041, %v1041
        %v1046 = vpack.c.bf16 %v1043, %v1043
        %v1047 = vld [vmem:[%s561] sm:$0x1]
        %v1048 = vld [vmem:[%s561 + $0x1] sm:$0x1]
        %v1049 = vsub.f32 1.0, %v1047
        %v1050 = vsub.f32 1.0, %v1048
        %v1051 = vmul.f32 %v1049, -1e+20
        %v1052 = vmul.f32 %v1050, -1e+20
        %v1055 = vperm.slane %v1051, 0
        %v1056 = vperm.slane %v1052, 0
        %v1060 = vsel %vm665, %v1045, 0
        %v1063 = vsel %vm665, %v1015, 0
        %1065 = vmatpush.bf16.xpose.msra.mxu0 0
        %1066 = vmatpush.bf16.xpose.msra.mxu0 0
        %1067 = vmatpush.bf16.xpose.msra.mxu0 0
        %1068 = vmatpush.bf16.xpose.msra.mxu0 0
        %1069 = vmatpush.bf16.xpose.msra.mxu0 0
        %1070 = vmatpush.bf16.xpose.msra.mxu0 0
        %1071 = vmatpush.bf16.xpose.msra.mxu0 0
        %1072 = vmatpush.bf16.xpose.msra.mxu0 %v1063
        %1073 = vmatmul.bf16.gmra.mxu0 %v1060
        %v1074 = vpop.f32.mrf.mxu0
        %v1075 = vadd.f32 %v1055, %v1074
        %v1076 = vpop.f32.mrf.mxu0
        %1077 = vdwg.mxu0
        %v1079 = vsel %vm665, %v1046, 0
        %v1082 = vsel %vm665, %v1016, 0
        %1084 = vmatpush.bf16.xpose.msra.mxu0 0
        %1085 = vmatpush.bf16.xpose.msra.mxu0 0
        %1086 = vmatpush.bf16.xpose.msra.mxu0 0
        %1087 = vmatpush.bf16.xpose.msra.mxu0 0
        %1088 = vmatpush.bf16.xpose.msra.mxu0 0
        %1089 = vmatpush.bf16.xpose.msra.mxu0 0
        %1090 = vmatpush.bf16.xpose.msra.mxu0 0
        %1091 = vmatpush.bf16.xpose.msra.mxu0 %v1082
        %1092 = vmatmul.bf16.gmra.mxu0 %v1079
        %v1093 = vpop.f32.mrf.mxu0
        %v1094 = vadd.f32 %v1056, %v1093
        %v1095 = vpop.f32.mrf.mxu0
        %1096 = vdwg.mxu0
        %v1097 = vsel %vm579, %v1075, -inf
        %1098 = vmax.xlane.f32.xlu0 %v1097
        %v1099 = vpop.xlane.xlu0 %1098
        %v1100 = vsel %vm579, %v1094, -inf
        %1101 = vmax.xlane.f32.xlu0 %v1100
        %v1102 = vpop.xlane.xlu0 %1101
        %v1103 = vsub.f32 %v1075, %v1099
        %v1104 = vsub.f32 %v1094, %v1102
        %v1105 = vmul.f32 %v1103, 1.442695
        %v1106 = vpow.pop %v1105
        %v1107 = vmul.f32 %v1104, 1.442695
        %v1108 = vpow.pop %v1107
        %v1109 = vsel %vm579, %v1106, 0.0
        %1110 = vadd.xlane.f32.xlu0 %v1109
        %v1111 = vpop.xlane.xlu0 %1110
        %v1112 = vsel %vm579, %v1108, 0.0
        %1113 = vadd.xlane.f32.xlu0 %v1112
        %v1114 = vpop.xlane.xlu0 %1113
        %v1115 = vrcp.pop %v1111
        %v1116 = vrcp.pop %v1114
        %v1117 = vmul.f32 %v1106, %v1115
        %v1118 = vmul.f32 %v1108, %v1116
        %v1119 = vpack.c.bf16 %v1117, %v1117
        %v1120 = vpack.c.bf16 %v1118, %v1118
        %v1122 = vsel %vm579, %v1119, 0
        %v1124 = vsel %vm688, %v1015, 0
        %1126 = vmatpush.bf16.msra.mxu0 0
        %1127 = vmatpush.bf16.msra.mxu0 0
        %1128 = vmatpush.bf16.msra.mxu0 0
        %1129 = vmatpush.bf16.msra.mxu0 0
        %1130 = vmatpush.bf16.msra.mxu0 0
        %1131 = vmatpush.bf16.msra.mxu0 0
        %1132 = vmatpush.bf16.msra.mxu0 0
        %1133 = vmatpush.bf16.msra.mxu0 %v1124
        %1134 = vmatmul.bf16.gmra.mxu0 %v1122
        %v1135 = vpop.f32.mrf.mxu0
        %v1136 = vadd.f32 0.0, %v1135
        %v1137 = vpop.f32.mrf.mxu0
        %1138 = vdwg.mxu0
        %v1140 = vsel %vm579, %v1120, 0
        %v1142 = vsel %vm688, %v1016, 0
        %1144 = vmatpush.bf16.msra.mxu0 0
        %1145 = vmatpush.bf16.msra.mxu0 0
        %1146 = vmatpush.bf16.msra.mxu0 0
        %1147 = vmatpush.bf16.msra.mxu0 0
        %1148 = vmatpush.bf16.msra.mxu0 0
        %1149 = vmatpush.bf16.msra.mxu0 0
        %1150 = vmatpush.bf16.msra.mxu0 0
        %1151 = vmatpush.bf16.msra.mxu0 %v1142
        %1152 = vmatmul.bf16.gmra.mxu0 %v1140
        %v1153 = vpop.f32.mrf.mxu0
        %v1154 = vadd.f32 0.0, %v1153
        %v1155 = vpop.f32.mrf.mxu0
        %1156 = vdwg.mxu0
        %v1157 = vld [vmem:[%s556] sm:$0xff]
        %v1158 = vld [vmem:[%s556 + $0x8] sm:$0xff]
        %1160 = vset.pattern.permute.xlu0 0
        %1161 = vperm.xlu0 %1160, %v1157
        %v1162 = vpop.permute.xlu0 %1161
        %1165 = vset.pattern.permute.xlu0 0
        %1166 = vperm.xlu0 %1165, %v1158
        %v1167 = vpop.permute.xlu0 %1166
        %v1169 = vmul.f32 %v1136, %v1162
        %v1170 = vmul.f32 %v1154, %v1167
        %v1171 = vld [vmem:[%s10] sm:$0x1]
        %v1173 = vperm.slane %v1171, 0
        %v1175 = vadd.f32 %v1169, %v1173
        %v1176 = vadd.f32 %v1170, %v1173
        %1177 = vst.msk [vmem:[%s543] sm:$0xff] %vm665, %v1175
        %1178 = vst.msk [vmem:[%s543 + $0x8] sm:$0xff] %vm665, %v1176
        %1181 = vrot.lane.b32.xlu0 %v1013, 32
        %v1182 = vpop.permute.xlu0 %1181
        %1183 = vrot.lane.b32.xlu0 %v1014, 32
        %v1184 = vpop.permute.xlu0 %1183
        %vm1187 = vcmask 523520
        %1188 = vst.msk [vmem:[%s543] sm:$0xff] %vm1187, %v1182
        %1189 = vst.msk [vmem:[%s543 + $0x8] sm:$0xff] %vm1187, %v1184
        %s1190 = sand.u32 %s296, 1
        %s1191 = scalar_lea.sflag [#allocation4], %s1190
        %s1192 = sand.u32 %s296, 1
        %s1193 = smul.addr %s1192, 16
        %s1194 = scalar_lea.vmem [#allocation11], %s1193
        // Predicated region
        $region85: #{tpu_custom_call.1} parent=63 // pred_check
          %p1195 = pneg %p306
        $region86: #{tpu_custom_call.1} parent=63 // pred_check_branch
          %1197 = sbr.rel (%p1195) target = $region88
        $region87: #{tpu_custom_call.1} parent=63 // pred_region
          %s1198 = smul.u32 2, %s32
          %1200 = vsyncadd %s1191, 0
          %s1201 = smul.addr %s1198, 8
          %s1202 = scalar_lea.hbm %s11, %s1201
          %s1203 = sshll.u32 %s1194, 4
          %s1204 = int_to_ptr.vmem [resolvable:$true] %s1203
          %s1205 = sshll.u32 %s1202, 4
          %s1206 = int_to_ptr.hbm [resolvable:$true] %s1205
          %1211 = dma.vmem_to_hbm [thread:$0]  %s1204, 256, %s1206, %s1191, 128, 128, 8
        $region88: #{tpu_custom_call.1} parent=63 // pred_fallthru
          _
      $region64: #{tpu_custom_call.1} parent=5 // pred_fallthru
        _
      %p1212 = scmp.le.s32.totalorder 2, %s27
      // Predicated region
      $region89: #{tpu_custom_call.1} parent=5 // pred_check
        %p1213 = pneg %p1212
      $region90: #{tpu_custom_call.1} parent=5 // pred_check_branch
        %1215 = sbr.rel (%p1213) target = $region92
      $region91: #{tpu_custom_call.1} parent=5 // pred_region
        %s1216 = ssub.s32 %s27, 2
        // Predicated region
        $region93: #{tpu_custom_call.1} parent=91 // pred_check
          %p1217 = pneg %p312
        $region94: #{tpu_custom_call.1} parent=91 // pred_check_branch
          %1219 = sbr.rel (%p1217) target = $region96
        $region95: #{tpu_custom_call.1} parent=91 // pred_region
          %s1220 = sand.u32 %s297, 1
          %s1221 = scalar_lea.sflag [#allocation4], %s1220
          %s1222 = sand.u32 %s297, 1
          %s1223 = smul.addr %s1222, 16
          %s1224 = scalar_lea.vmem [#allocation11], %s1223
          %1226 = dma.done %s1221, 256
        $region96: #{tpu_custom_call.1} parent=91 // pred_fallthru
          _
      $region92: #{tpu_custom_call.1} parent=5 // pred_fallthru
        _
    $region6: #{tpu_custom_call.1} parent=1 // loop_footer
      %s31 = sadd.s32 1, %s27
    $region7: #{tpu_custom_call.1} parent=1 // loop_footer_branch
      %26 = sbr.rel target = $region3
    $region8: #{tpu_custom_call.1} parent=1 // loop_exit
      _
    %1227 = vsyncpa [#allocation3], 1
    %s1228 = scalar_lea.sflag [#allocation3], 1
    %1229 = vsyncpa %s1228, 1
    %1230 = vsyncpa [#allocation6], 1
    %s1231 = scalar_lea.sflag [#allocation6], 1
    %1232 = vsyncpa %s1231, 1
    %1233 = vsyncpa [#allocation9], 1
    %1234 = vsyncpa [#allocation4], 1
    %s1235 = scalar_lea.sflag [#allocation4], 1
    %1236 = vsyncpa %s1235, 1

</llo_original>
